<compile_context>
chip_gen: v6e
topology: v6e:2x2x1
jax: 0.10.0
libtpu: 0.0.40
codegen_flags: <defaults>
</compile_context>

<pallas_src>
import math
import functools

import jax
import jax.numpy as jnp
from jax.experimental import pallas as pl
from jax.experimental.pallas import tpu as pltpu


def _round_up(v, m):
    return ((v + m - 1) // m) * m


# ----------------------------- Pallas kernel --------------------------------
def _transformer_layer_kernel(
    x_ref,       # (nb, L, Cp) f32  — padded channels are zero
    wqkv_ref,    # (Cp, Wp)   cdt  — [q | k | v] fused in-proj (scale folded into q)
    bqkv_ref,    # (1, Wp)    f32  — q segment pre-scaled
    wo_ref,      # (C, Cp)    cdt  — MHA out-proj (rows = concatenated head channels)
    bo_ref,      # (1, Cp)    f32
    wff_ref,     # (Cp, Cp)   cdt  — fused fc1·fc2
    o_ref,       # (nb, L, Cp) f32
    *, nb, seq, num_heads, head_dim, c, exact_softmax,
):
    L, H, hd, C = seq, num_heads, head_dim, c
    Cp = x_ref.shape[-1]
    cdt = wqkv_ref.dtype                     # MXU compute dtype (f32 or bf16)

    # Merge batch into the matmul M-dim (leading-dim-only reshape: free).
    x = x_ref[...].reshape(nb * L, Cp)       # f32, kept for the residual path
    xm = x.astype(cdt)

    # --- single lane-dense q/k/v projection: (M, Cp) @ (Cp, Wp), f32 accumulate ---
    qkv = jnp.dot(xm, wqkv_ref[...], preferred_element_type=jnp.float32)
    qkv = qkv + bqkv_ref[...]                # (M, Wp) f32; cols [0:C)=q [C:2C)=k [2C:3C)=v

    # --- per-(batch, head) scaled-dot-product attention (scale already in Wq) ---
    attn_in = []
    for b in range(nb):                      # static sublane row slices (multiples of L)
        qkv_b = qkv[b * L:(b + 1) * L]       # (L, Wp)
        heads = []
        for h in range(H):                   # static lane slices (multiples of hd)
            q_h = qkv_b[:, h * hd:(h + 1) * hd]
            k_h = qkv_b[:, C + h * hd:C + (h + 1) * hd]
            v_h = qkv_b[:, 2 * C + h * hd:2 * C + (h + 1) * hd]
            s = jnp.einsum("ld,md->lm", q_h.astype(cdt), k_h.astype(cdt),
                           preferred_element_type=jnp.float32)       # (L, L)
            s = s - jnp.max(s, axis=-1, keepdims=True)
            p = jnp.exp(s)
            denom = jnp.sum(p, axis=-1, keepdims=True)
            if exact_softmax:
                p = p / denom
            else:
                p = p * pl.reciprocal(denom, approx=True)            # EUP slot
            heads.append(jnp.dot(p.astype(cdt), v_h.astype(cdt),
                                 preferred_element_type=jnp.float32))  # (L, hd)
        attn_in.append(jnp.concatenate(heads, axis=-1))              # (L, C)
    oh = attn_in[0] if nb == 1 else jnp.concatenate(attn_in, axis=0)  # (M, C)

    # --- MHA out-projection: one K=C contraction over all heads at once ---
    attn = jnp.dot(oh.astype(cdt), wo_ref[...],
                   preferred_element_type=jnp.float32) + bo_ref[...]  # (M, Cp)
    x1 = attn + x                                                     # residual (f32)

    # --- fused feed-forward (fc2(fc1(x)) == one (Cp,Cp) matmul) + residual ---
    y = jnp.dot(x1.astype(cdt), wff_ref[...],
                preferred_element_type=jnp.float32) + x1
    o_ref[...] = y.reshape(nb, L, Cp)        # lane-dense store (Cp multiple of 128)


# ------------------------------- wrapper -------------------------------------
def transformer_layer_pallas(x_lnc, params, num_heads, *,
                             compute_dtype=jnp.bfloat16, batch_block=1):
    L, N, C = x_lnc.shape
    assert C % num_heads == 0
    assert N % batch_block == 0
    H = num_heads
    hd = C // H
    nb = batch_block
    scale = 1.0 / math.sqrt(hd)

    Cp = _round_up(C, 128)          # lane-dense channel width
    Wp = _round_up(3 * C, 128)      # lane-dense fused qkv width

    f32 = jnp.float32
    x_nlc = jnp.transpose(x_lnc, (1, 0, 2)).astype(f32)               # (N, L, C)
    x_pad = jnp.pad(x_nlc, ((0, 0), (0, 0), (0, Cp - C)))             # (N, L, Cp)

    wq = params["wq"].astype(f32)
    wk = params["wk"].astype(f32)
    wv = params["wv"].astype(f32)
    wiq, wik, wiv = jnp.split(params["in_proj_weight"].astype(f32), 3, axis=0)
    biq, bik, biv = jnp.split(params["in_proj_bias"].astype(f32), 3, axis=0)

    # Fuse chained linears: x @ Wq.T @ Wiq.T == x @ (Wq.T @ Wiq.T); fold the
    # 1/sqrt(hd) attention scale (and q bias) into the fused q weight/bias.
    wq_f = (wq.T @ wiq.T) * scale                                     # (C, C)
    wk_f = wk.T @ wik.T
    wv_f = wv.T @ wiv.T
    wqkv = jnp.concatenate([wq_f, wk_f, wv_f], axis=1)                # (C, 3C)
    wqkv = jnp.pad(wqkv, ((0, Cp - C), (0, Wp - 3 * C)))              # (Cp, Wp)
    bqkv = jnp.concatenate([biq * scale, bik, biv]).reshape(1, 3 * C)
    bqkv = jnp.pad(bqkv, ((0, 0), (0, Wp - 3 * C)))                   # (1, Wp)

    wo = jnp.pad(params["out_proj_weight"].astype(f32).T,
                 ((0, 0), (0, Cp - C)))                               # (C, Cp)
    bo = jnp.pad(params["out_proj_bias"].astype(f32).reshape(1, C),
                 ((0, 0), (0, Cp - C)))                               # (1, Cp)

    # Fused feed-forward: (x @ Wfc1.T) @ Wfc2.T == x @ (Wfc1.T @ Wfc2.T).
    wff = params["wfc1"].astype(f32).T @ params["wfc2"].astype(f32).T
    wff = jnp.pad(wff, ((0, Cp - C), (0, Cp - C)))                    # (Cp, Cp)

    cdt = jnp.dtype(compute_dtype)           # MXU input dtype; biases stay f32
    wqkv, wo, wff = (w.astype(cdt) for w in (wqkv, wo, wff))

    kernel = functools.partial(
        _transformer_layer_kernel,
        nb=nb, seq=L, num_heads=H, head_dim=hd, c=C,
        exact_softmax=(cdt == jnp.float32),
    )

    # Derive the scoped-VMEM limit from the actual buffers (double-buffered
    # blocks + weights + intermediates), capped for v7x's 64 MiB/TC budget.
    w_bytes = (Cp * Wp + C * Cp + Cp * Cp) * cdt.itemsize + (Wp + Cp) * 4
    io_bytes = 2 * 2 * (nb * L * Cp * 4)                  # x + out, double-buffered
    interm_bytes = nb * L * (Wp + 4 * Cp) * 4 + H * L * L * 4
    vmem_limit = int(min(48 << 20,
                         max(16 << 20, 2 * w_bytes + io_bytes + interm_bytes + (4 << 20))))

    grid = (N // nb,)
    out_pad = pl.pallas_call(
        kernel,
        out_shape=jax.ShapeDtypeStruct((N, L, Cp), jnp.float32),
        grid_spec=pltpu.PrefetchScalarGridSpec(
            num_scalar_prefetch=0,
            grid=grid,
            in_specs=[
                pl.BlockSpec((nb, L, Cp), lambda n: (n, 0, 0)),       # x
                pl.BlockSpec((Cp, Wp), lambda n: (0, 0)),             # wqkv
                pl.BlockSpec((1, Wp), lambda n: (0, 0)),              # bqkv
                pl.BlockSpec((C, Cp), lambda n: (0, 0)),              # wo
                pl.BlockSpec((1, Cp), lambda n: (0, 0)),              # bo
                pl.BlockSpec((Cp, Cp), lambda n: (0, 0)),             # wff
            ],
            out_specs=pl.BlockSpec((nb, L, Cp), lambda n: (n, 0, 0)),
        ),
        compiler_params=pltpu.CompilerParams(
            dimension_semantics=("parallel",),   # v7x: grid steps split across TCs
            vmem_limit_bytes=vmem_limit,
        ),
    )(x_pad, wqkv, bqkv, wo, bo, wff)

    out_nlc = out_pad[..., :C]                                        # drop lane padding
    return jnp.transpose(out_nlc, (1, 0, 2))                          # back to (L, N, C)


# -------------------------- pure-JAX reference --------------------------------
def transformer_layer_reference(x, params, num_heads):
    L, N, C = x.shape
    hd = C // num_heads

    def lin(a, w):
        return jnp.einsum("lnc,oc->lno", a, w)

    q0 = lin(x, params["wq"])
    k0 = lin(x, params["wk"])
    v0 = lin(x, params["wv"])

    wiq, wik, wiv = jnp.split(params["in_proj_weight"], 3, axis=0)
    biq, bik, biv = jnp.split(params["in_proj_bias"], 3, axis=0)
    q = lin(q0, wiq) + biq
    k = lin(k0, wik) + bik
    v = lin(v0, wiv) + biv

    qh = q.reshape(L, N, num_heads, hd)
    kh = k.reshape(L, N, num_heads, hd)
    vh = v.reshape(L, N, num_heads, hd)
    scale = 1.0 / math.sqrt(hd)
    s = jnp.einsum("lnhd,mnhd->nhlm", qh * scale, kh)
    p = jax.nn.softmax(s, axis=-1)
    o = jnp.einsum("nhlm,mnhd->lnhd", p, vh).reshape(L, N, C)
    o = lin(o, params["out_proj_weight"]) + params["out_proj_bias"]

    x1 = o + x
    y = lin(lin(x1, params["wfc1"]), params["wfc2"]) + x1
    return y


# --------------------------------- main ---------------------------------------
if __name__ == "__main__":
    L, N, C = 8, 2, 32          # seq, batch, embed
    NUM_HEADS = 4

    key = jax.random.PRNGKey(0)
    keys = jax.random.split(key, 10)

    def init(k, shape, scale=0.05):
        return jax.random.normal(k, shape, dtype=jnp.float32) * scale

    params = {
        "wq": init(keys[0], (C, C)),
        "wk": init(keys[1], (C, C)),
        "wv": init(keys[2], (C, C)),
        "in_proj_weight": init(keys[3], (3 * C, C)),
        "in_proj_bias": init(keys[4], (3 * C,)),
        "out_proj_weight": init(keys[5], (C, C)),
        "out_proj_bias": init(keys[6], (C,)),
        "wfc1": init(keys[7], (C, C)),
        "wfc2": init(keys[8], (C, C)),
    }

    x = jax.random.normal(keys[9], (L, N, C), dtype=jnp.float32)

    ref = transformer_layer_reference(x, params, NUM_HEADS)

    # f32 MXU path (exact softmax reciprocal).
    out_f32 = transformer_layer_pallas(x, params, NUM_HEADS, compute_dtype=jnp.float32)
    out_f32 = jax.block_until_ready(out_f32)
    assert out_f32.shape == (L, N, C)
    assert jnp.allclose(out_f32, ref, atol=1e-3, rtol=1e-3), (
        f"f32 max abs diff {jnp.max(jnp.abs(out_f32 - ref))}"
    )

    # Default bf16 MXU path (valid on v5e/v6e/v7x: non-dot math stays f32).
    out_bf16 = jax.block_until_ready(
        transformer_layer_pallas(x, params, NUM_HEADS))
    assert jnp.allclose(out_bf16, ref, atol=3e-2, rtol=3e-2), (
        f"bf16 max abs diff {jnp.max(jnp.abs(out_bf16 - ref))}"
    )

    # Batch-merged variant (single-TC v5e/v6e): whole batch in one grid step,
    # matmul M-dim = N*L.
    out_merged = jax.block_until_ready(
        transformer_layer_pallas(x, params, NUM_HEADS,
                                 compute_dtype=jnp.float32, batch_block=N))
    assert jnp.allclose(out_merged, ref, atol=1e-3, rtol=1e-3), (
        f"batch-merged max abs diff {jnp.max(jnp.abs(out_merged - ref))}"
    )

    print("KERNEL_OK")
</pallas_src>

<mosaic_0001>
module attributes {stable_mosaic.version = 11 : i64} {
  func.func @_transformer_layer_kernel(%arg0: i32, %arg1: memref<1x8x128xf32, #tpu.memory_space<vmem>>, %arg2: memref<128x128xf32, #tpu.memory_space<vmem>>, %arg3: memref<1x128xf32, #tpu.memory_space<vmem>>, %arg4: memref<32x128xf32, #tpu.memory_space<vmem>>, %arg5: memref<1x128xf32, #tpu.memory_space<vmem>>, %arg6: memref<128x128xf32, #tpu.memory_space<vmem>>, %arg7: memref<1x8x128xf32, #tpu.memory_space<vmem>>) attributes {dimension_semantics = [#tpu.dimension_semantics<parallel>], iteration_bounds = array<i64: 2>, scalar_prefetch = 0 : i64, scratch_operands = 0 : i64, tpu.core_type = #tpu.core_type<tc>, window_params = [{transform_indices = @transform_0, window_bounds = array<i64: 1, 8, 128>}, {pipeline_mode = #tpu.pipeline_mode<synchronous>, transform_indices = @transform_1, window_bounds = array<i64: 128, 128>}, {pipeline_mode = #tpu.pipeline_mode<synchronous>, transform_indices = @transform_2, window_bounds = array<i64: 1, 128>}, {pipeline_mode = #tpu.pipeline_mode<synchronous>, transform_indices = @transform_3, window_bounds = array<i64: 32, 128>}, {pipeline_mode = #tpu.pipeline_mode<synchronous>, transform_indices = @transform_4, window_bounds = array<i64: 1, 128>}, {pipeline_mode = #tpu.pipeline_mode<synchronous>, transform_indices = @transform_5, window_bounds = array<i64: 128, 128>}, {transform_indices = @transform_6, window_bounds = array<i64: 1, 8, 128>}]} {
    %c0 = arith.constant 0 : index
    %c0_0 = arith.constant 0 : index
    %c0_1 = arith.constant 0 : index
    %0 = vector.load %arg1[%c0, %c0_0, %c0_1] : memref<1x8x128xf32, #tpu.memory_space<vmem>>, vector<1x8x128xf32>
    %1 = vector.shape_cast %0 : vector<1x8x128xf32> to vector<8x128xf32>
    %c0_2 = arith.constant 0 : index
    %c0_3 = arith.constant 0 : index
    %2 = vector.load %arg2[%c0_2, %c0_3] : memref<128x128xf32, #tpu.memory_space<vmem>>, vector<128x128xf32>
    %cst = arith.constant dense<0.000000e+00> : vector<8x128xf32>
    %3 = tpu.matmul %1, %2, %cst {dimension_numbers = #tpu.dot_dimension_numbers<[1], [0], [0], [1], [0, 0, 1, 1], [], []>} : vector<8x128xf32>, vector<128x128xf32>, vector<8x128xf32> -> vector<8x128xf32>
    %c0_4 = arith.constant 0 : index
    %c0_5 = arith.constant 0 : index
    %4 = vector.load %arg3[%c0_4, %c0_5] : memref<1x128xf32, #tpu.memory_space<vmem>>, vector<1x128xf32>
    %5 = vector.broadcast %4 : vector<1x128xf32> to vector<8x128xf32>
    %6 = arith.addf %3, %5 : vector<8x128xf32>
    %7 = vector.extract_strided_slice %6 {offsets = [0, 0], sizes = [8, 8], strides = [1, 1]} : vector<8x128xf32> to vector<8x8xf32>
    %8 = vector.extract_strided_slice %6 {offsets = [0, 32], sizes = [8, 8], strides = [1, 1]} : vector<8x128xf32> to vector<8x8xf32>
    %9 = vector.extract_strided_slice %6 {offsets = [0, 64], sizes = [8, 8], strides = [1, 1]} : vector<8x128xf32> to vector<8x8xf32>
    "tpu.trace_start"() <{level = 10 : i32, message = "ld,md->lm"}> : () -> ()
    %cst_6 = arith.constant dense<0.000000e+00> : vector<8x8xf32>
    %10 = tpu.matmul %7, %8, %cst_6 {dimension_numbers = #tpu.dot_dimension_numbers<[1], [1], [0], [0], [0, 0, 1, 0], [], []>} : vector<8x8xf32>, vector<8x8xf32>, vector<8x8xf32> -> vector<8x8xf32>
    "tpu.trace_stop"() : () -> ()
    %cst_7 = arith.constant dense<0xFF800000> : vector<8xf32>
    %11 = vector.multi_reduction <maximumf>, %10, %cst_7 [1] : vector<8x8xf32> to vector<8xf32>
    %12 = vector.shape_cast %11 : vector<8xf32> to vector<8x1xf32>
    %13 = vector.broadcast %12 : vector<8x1xf32> to vector<8x8xf32>
    %14 = arith.subf %10, %13 : vector<8x8xf32>
    %15 = math.exp %14 : vector<8x8xf32>
    %cst_8 = arith.constant dense<0.000000e+00> : vector<8xf32>
    %16 = vector.multi_reduction <add>, %15, %cst_8 [1] : vector<8x8xf32> to vector<8xf32>
    %17 = vector.shape_cast %16 : vector<8xf32> to vector<8x1xf32>
    %18 = vector.broadcast %17 : vector<8x1xf32> to vector<8x8xf32>
    %19 = arith.divf %15, %18 : vector<8x8xf32>
    %cst_9 = arith.constant dense<0.000000e+00> : vector<8x8xf32>
    %20 = tpu.matmul %19, %9, %cst_9 {dimension_numbers = #tpu.dot_dimension_numbers<[1], [0], [0], [1], [0, 0, 1, 1], [], []>} : vector<8x8xf32>, vector<8x8xf32>, vector<8x8xf32> -> vector<8x8xf32>
    %21 = vector.extract_strided_slice %6 {offsets = [0, 8], sizes = [8, 8], strides = [1, 1]} : vector<8x128xf32> to vector<8x8xf32>
    %22 = vector.extract_strided_slice %6 {offsets = [0, 40], sizes = [8, 8], strides = [1, 1]} : vector<8x128xf32> to vector<8x8xf32>
    %23 = vector.extract_strided_slice %6 {offsets = [0, 72], sizes = [8, 8], strides = [1, 1]} : vector<8x128xf32> to vector<8x8xf32>
    "tpu.trace_start"() <{level = 10 : i32, message = "ld,md->lm"}> : () -> ()
    %cst_10 = arith.constant dense<0.000000e+00> : vector<8x8xf32>
    %24 = tpu.matmul %21, %22, %cst_10 {dimension_numbers = #tpu.dot_dimension_numbers<[1], [1], [0], [0], [0, 0, 1, 0], [], []>} : vector<8x8xf32>, vector<8x8xf32>, vector<8x8xf32> -> vector<8x8xf32>
    "tpu.trace_stop"() : () -> ()
    %cst_11 = arith.constant dense<0xFF800000> : vector<8xf32>
    %25 = vector.multi_reduction <maximumf>, %24, %cst_11 [1] : vector<8x8xf32> to vector<8xf32>
    %26 = vector.shape_cast %25 : vector<8xf32> to vector<8x1xf32>
    %27 = vector.broadcast %26 : vector<8x1xf32> to vector<8x8xf32>
    %28 = arith.subf %24, %27 : vector<8x8xf32>
    %29 = math.exp %28 : vector<8x8xf32>
    %cst_12 = arith.constant dense<0.000000e+00> : vector<8xf32>
    %30 = vector.multi_reduction <add>, %29, %cst_12 [1] : vector<8x8xf32> to vector<8xf32>
    %31 = vector.shape_cast %30 : vector<8xf32> to vector<8x1xf32>
    %32 = vector.broadcast %31 : vector<8x1xf32> to vector<8x8xf32>
    %33 = arith.divf %29, %32 : vector<8x8xf32>
    %cst_13 = arith.constant dense<0.000000e+00> : vector<8x8xf32>
    %34 = tpu.matmul %33, %23, %cst_13 {dimension_numbers = #tpu.dot_dimension_numbers<[1], [0], [0], [1], [0, 0, 1, 1], [], []>} : vector<8x8xf32>, vector<8x8xf32>, vector<8x8xf32> -> vector<8x8xf32>
    %35 = vector.extract_strided_slice %6 {offsets = [0, 16], sizes = [8, 8], strides = [1, 1]} : vector<8x128xf32> to vector<8x8xf32>
    %36 = vector.extract_strided_slice %6 {offsets = [0, 48], sizes = [8, 8], strides = [1, 1]} : vector<8x128xf32> to vector<8x8xf32>
    %37 = vector.extract_strided_slice %6 {offsets = [0, 80], sizes = [8, 8], strides = [1, 1]} : vector<8x128xf32> to vector<8x8xf32>
    "tpu.trace_start"() <{level = 10 : i32, message = "ld,md->lm"}> : () -> ()
    %cst_14 = arith.constant dense<0.000000e+00> : vector<8x8xf32>
    %38 = tpu.matmul %35, %36, %cst_14 {dimension_numbers = #tpu.dot_dimension_numbers<[1], [1], [0], [0], [0, 0, 1, 0], [], []>} : vector<8x8xf32>, vector<8x8xf32>, vector<8x8xf32> -> vector<8x8xf32>
    "tpu.trace_stop"() : () -> ()
    %cst_15 = arith.constant dense<0xFF800000> : vector<8xf32>
    %39 = vector.multi_reduction <maximumf>, %38, %cst_15 [1] : vector<8x8xf32> to vector<8xf32>
    %40 = vector.shape_cast %39 : vector<8xf32> to vector<8x1xf32>
    %41 = vector.broadcast %40 : vector<8x1xf32> to vector<8x8xf32>
    %42 = arith.subf %38, %41 : vector<8x8xf32>
    %43 = math.exp %42 : vector<8x8xf32>
    %cst_16 = arith.constant dense<0.000000e+00> : vector<8xf32>
    %44 = vector.multi_reduction <add>, %43, %cst_16 [1] : vector<8x8xf32> to vector<8xf32>
    %45 = vector.shape_cast %44 : vector<8xf32> to vector<8x1xf32>
    %46 = vector.broadcast %45 : vector<8x1xf32> to vector<8x8xf32>
    %47 = arith.divf %43, %46 : vector<8x8xf32>
    %cst_17 = arith.constant dense<0.000000e+00> : vector<8x8xf32>
    %48 = tpu.matmul %47, %37, %cst_17 {dimension_numbers = #tpu.dot_dimension_numbers<[1], [0], [0], [1], [0, 0, 1, 1], [], []>} : vector<8x8xf32>, vector<8x8xf32>, vector<8x8xf32> -> vector<8x8xf32>
    %49 = vector.extract_strided_slice %6 {offsets = [0, 24], sizes = [8, 8], strides = [1, 1]} : vector<8x128xf32> to vector<8x8xf32>
    %50 = vector.extract_strided_slice %6 {offsets = [0, 56], sizes = [8, 8], strides = [1, 1]} : vector<8x128xf32> to vector<8x8xf32>
    %51 = vector.extract_strided_slice %6 {offsets = [0, 88], sizes = [8, 8], strides = [1, 1]} : vector<8x128xf32> to vector<8x8xf32>
    "tpu.trace_start"() <{level = 10 : i32, message = "ld,md->lm"}> : () -> ()
    %cst_18 = arith.constant dense<0.000000e+00> : vector<8x8xf32>
    %52 = tpu.matmul %49, %50, %cst_18 {dimension_numbers = #tpu.dot_dimension_numbers<[1], [1], [0], [0], [0, 0, 1, 0], [], []>} : vector<8x8xf32>, vector<8x8xf32>, vector<8x8xf32> -> vector<8x8xf32>
    "tpu.trace_stop"() : () -> ()
    %cst_19 = arith.constant dense<0xFF800000> : vector<8xf32>
    %53 = vector.multi_reduction <maximumf>, %52, %cst_19 [1] : vector<8x8xf32> to vector<8xf32>
    %54 = vector.shape_cast %53 : vector<8xf32> to vector<8x1xf32>
    %55 = vector.broadcast %54 : vector<8x1xf32> to vector<8x8xf32>
    %56 = arith.subf %52, %55 : vector<8x8xf32>
    %57 = math.exp %56 : vector<8x8xf32>
    %cst_20 = arith.constant dense<0.000000e+00> : vector<8xf32>
    %58 = vector.multi_reduction <add>, %57, %cst_20 [1] : vector<8x8xf32> to vector<8xf32>
    %59 = vector.shape_cast %58 : vector<8xf32> to vector<8x1xf32>
    %60 = vector.broadcast %59 : vector<8x1xf32> to vector<8x8xf32>
    %61 = arith.divf %57, %60 : vector<8x8xf32>
    %cst_21 = arith.constant dense<0.000000e+00> : vector<8x8xf32>
    %62 = tpu.matmul %61, %51, %cst_21 {dimension_numbers = #tpu.dot_dimension_numbers<[1], [0], [0], [1], [0, 0, 1, 1], [], []>} : vector<8x8xf32>, vector<8x8xf32>, vector<8x8xf32> -> vector<8x8xf32>
    %63 = tpu.concatenate %20, %34, %48, %62 in 1 : vector<8x8xf32>, vector<8x8xf32>, vector<8x8xf32>, vector<8x8xf32> -> vector<8x32xf32>
    %c0_22 = arith.constant 0 : index
    %c0_23 = arith.constant 0 : index
    %64 = vector.load %arg4[%c0_22, %c0_23] : memref<32x128xf32, #tpu.memory_space<vmem>>, vector<32x128xf32>
    %cst_24 = arith.constant dense<0.000000e+00> : vector<8x128xf32>
    %65 = tpu.matmul %63, %64, %cst_24 {dimension_numbers = #tpu.dot_dimension_numbers<[1], [0], [0], [1], [0, 0, 1, 1], [], []>} : vector<8x32xf32>, vector<32x128xf32>, vector<8x128xf32> -> vector<8x128xf32>
    %c0_25 = arith.constant 0 : index
    %c0_26 = arith.constant 0 : index
    %66 = vector.load %arg5[%c0_25, %c0_26] : memref<1x128xf32, #tpu.memory_space<vmem>>, vector<1x128xf32>
    %67 = vector.broadcast %66 : vector<1x128xf32> to vector<8x128xf32>
    %68 = arith.addf %65, %67 : vector<8x128xf32>
    %69 = arith.addf %68, %1 : vector<8x128xf32>
    %c0_27 = arith.constant 0 : index
    %c0_28 = arith.constant 0 : index
    %70 = vector.load %arg6[%c0_27, %c0_28] : memref<128x128xf32, #tpu.memory_space<vmem>>, vector<128x128xf32>
    %cst_29 = arith.constant dense<0.000000e+00> : vector<8x128xf32>
    %71 = tpu.matmul %69, %70, %cst_29 {dimension_numbers = #tpu.dot_dimension_numbers<[1], [0], [0], [1], [0, 0, 1, 1], [], []>} : vector<8x128xf32>, vector<128x128xf32>, vector<8x128xf32> -> vector<8x128xf32>
    %72 = arith.addf %71, %69 : vector<8x128xf32>
    %73 = vector.shape_cast %72 : vector<8x128xf32> to vector<1x8x128xf32>
    %c0_30 = arith.constant 0 : index
    %c0_31 = arith.constant 0 : index
    %c0_32 = arith.constant 0 : index
    %74 = vector.load %arg7[%c0_30, %c0_31, %c0_32] : memref<1x8x128xf32, #tpu.memory_space<vmem>>, vector<1x8x128xf32>
    tpu.vector_store %arg7[%c0_30, %c0_31, %c0_32], %73 {strides = array<i32>} : memref<1x8x128xf32, #tpu.memory_space<vmem>>, vector<1x8x128xf32>,
    return
  }
  func.func @transform_0(%arg0: i32) -> (i32, i32, i32) {
    %c0_i32 = arith.constant 0 : i32
    %c0_i32_0 = arith.constant 0 : i32
    %c0_i32_1 = arith.constant 0 : i32
    return %arg0, %c0_i32, %c0_i32_0 : i32, i32, i32
  }
  func.func @transform_1(%arg0: i32) -> (i32, i32) {
    %c0_i32 = arith.constant 0 : i32
    %c0_i32_0 = arith.constant 0 : i32
    %c0_i32_1 = arith.constant 0 : i32
    return %c0_i32, %c0_i32_0 : i32, i32
  }
  func.func @transform_2(%arg0: i32) -> (i32, i32) {
    %c0_i32 = arith.constant 0 : i32
    %c0_i32_0 = arith.constant 0 : i32
    %c0_i32_1 = arith.constant 0 : i32
    return %c0_i32, %c0_i32_0 : i32, i32
  }
  func.func @transform_3(%arg0: i32) -> (i32, i32) {
    %c0_i32 = arith.constant 0 : i32
    %c0_i32_0 = arith.constant 0 : i32
    %c0_i32_1 = arith.constant 0 : i32
    return %c0_i32, %c0_i32_0 : i32, i32
  }
  func.func @transform_4(%arg0: i32) -> (i32, i32) {
    %c0_i32 = arith.constant 0 : i32
    %c0_i32_0 = arith.constant 0 : i32
    %c0_i32_1 = arith.constant 0 : i32
    return %c0_i32, %c0_i32_0 : i32, i32
  }
  func.func @transform_5(%arg0: i32) -> (i32, i32) {
    %c0_i32 = arith.constant 0 : i32
    %c0_i32_0 = arith.constant 0 : i32
    %c0_i32_1 = arith.constant 0 : i32
    return %c0_i32, %c0_i32_0 : i32, i32
  }
  func.func @transform_6(%arg0: i32) -> (i32, i32, i32) {
    %c0_i32 = arith.constant 0 : i32
    %c0_i32_0 = arith.constant 0 : i32
    %c0_i32_1 = arith.constant 0 : i32
    return %arg0, %c0_i32, %c0_i32_0 : i32, i32, i32
  }
}

</mosaic_0001>

<llo_original>
// kernel: tpu_custom_call.1
$region0: #{tpu_custom_call.1}
  #allocation0 [shape = 'u32[]', space=smem, size = 0x4, offset = 0x4, fixed_abs, tag = 'smem constant byte address 0x4 - core index']
  #allocation1 [shape = 'u32[144,128]{1,0:T(1,128)}', space=vmem, size = 0x12000, scoped, tag = 'internal scratch']
  %s0 = inlined_call_operand.hbm [shape: f32[2,8,128], index: 0, kind: input, shape index: {}]
  %s1 = inlined_call_operand.hbm [shape: f32[128,128], index: 1, kind: input, shape index: {}]
  %s2 = inlined_call_operand.vmem [shape: f32[1,128], index: 2, kind: input, shape index: {}]
  %s3 = inlined_call_operand.hbm [shape: f32[32,128], index: 3, kind: input, shape index: {}]
  %s4 = inlined_call_operand.vmem [shape: f32[1,128], index: 4, kind: input, shape index: {}]
  %s5 = inlined_call_operand.hbm [shape: f32[128,128], index: 5, kind: input, shape index: {}]
  %s6 = inlined_call_operand.hbm [shape: f32[2,8,128], index: 6, kind: output, shape index: {}]
  %s7 = sld [smem:[#allocation0]]
  $region73: #{tpu_custom_call.1} parent=0
    _
  %s9 = ssub.s32 1, %s7
  %s10 = scalar_select 0, %s9, %s7
  $region1: #{tpu_custom_call.1} parent=0
    #allocation2 [shape = 'u8[8192]{0}', space=vmem, size = 0x2000, scoped, tag = 'input window, operand 0']
    #allocation3 [shape = 's32[2]{0}', space=sflag, size = 0x8, scoped, tag = 'scoped memory for tpu_custom_call.1']
    #allocation4 [shape = 's32[2]{0}', space=sflag, size = 0x8, scoped, tag = 'scoped memory for tpu_custom_call.1']
    #allocation5 [shape = 'u8[65536]{0}', space=vmem, size = 0x10000, scoped, tag = 'input window, operand 1, single buffered']
    #allocation6 [shape = 's32[1]{0}', space=sflag, size = 0x4, scoped, tag = 'scoped memory for tpu_custom_call.1']
    #allocation7 [shape = 'u8[16384]{0}', space=vmem, size = 0x4000, scoped, tag = 'input window, operand 3, single buffered']
    #allocation8 [shape = 'u8[65536]{0}', space=vmem, size = 0x10000, scoped, tag = 'input window, operand 5, single buffered']
    #allocation9 [shape = 's32[1]{0}', space=sflag, size = 0x4, scoped, tag = 'scoped memory for tpu_custom_call.1']
    #allocation10 [shape = 'u8[8192]{0}', space=vmem, size = 0x2000, scoped, tag = 'output window, operand 0']
    %11 = vsyncpa [#allocation3], 0
    %s12 = scalar_lea.sflag [#allocation3], 1
    %13 = vsyncpa %s12, 0
    %14 = vsyncpa [#allocation6], 0
    %15 = vsyncpa [#allocation9], 0
    %16 = vsyncpa [#allocation4], 0
    %s17 = scalar_lea.sflag [#allocation4], 1
    %18 = vsyncpa %s17, 0
    loop: start=0, step=1, limit=4
    $region2: #{tpu_custom_call.1} parent=1 // loop_pre_header
      _
    $region3: #{tpu_custom_call.1} parent=1 // loop_header
      %s20 = sphi 0, %s24
      %p21 = scmp.ge.s32.totalorder %s20, 4
      %s30 = sphi 0, %s32
      %s33 = sphi 0, %s30
      %s34 = sphi 0, %s33
      %s50 = sphi 0, %s34
      %s54 = sphi 0, %s54
      %s56 = sphi 0, %s54
      %s57 = sphi 0, %s56
      %s71 = sphi 0, %s57
      %s75 = sphi 0, %s75
      %s77 = sphi 0, %s75
      %s78 = sphi 0, %s77
      %s92 = sphi 0, %s78
      %s96 = sphi 0, %s96
      %s98 = sphi 0, %s96
      %s99 = sphi 0, %s98
      %s113 = sphi 0, %s99
      %s117 = sphi 0, %s117
      %s119 = sphi 0, %s117
      %s120 = sphi 0, %s119
      %s134 = sphi 0, %s120
      %s138 = sphi 0, %s138
      %s140 = sphi 0, %s138
      %s141 = sphi 0, %s140
      %s155 = sphi 0, %s141
      %s161 = sphi 0, %s163
      %s164 = sphi 0, %s161
      %s165 = sphi 0, %s164
      %s181 = sphi 0, %s165
    $region4: #{tpu_custom_call.1} parent=1 // loop_header_branch
      %23 = sbr.rel (%p21) target = $region8
    $region5: #{tpu_custom_call.1} parent=1 // loop_body
      %s25 = ssub.s32 %s20, 1
      %s26 = ssub.s32 %s20, 2
      %s27 = sadd.s32 %s20, 1
      %s28 = ssub.s32 %s20, %s27
      %p29 = scmp.eq.s32.totalorder %s28, 0
      %s31 = sadd.s32 %s30, 1
      %s32 = scalar_select %p29, %s30, %s31
      %p35 = pneg %p29
      %p36 = scmp.eq.s32.totalorder %s20, 1
      %p37 = por %p35, %p36
      %p38 = scmp.ne.s32.totalorder %s30, %s33
      %p39 = scmp.eq.s32.totalorder %s20, 0
      %p40 = por %p38, %p39
      %p41 = scmp.ne.s32.totalorder %s30, %s33
      %p42 = scmp.eq.s32.totalorder %s25, 1
      %p43 = por %p41, %p42
      %p44 = scmp.ne.s32.totalorder %s33, %s34
      %p45 = scmp.eq.s32.totalorder %s25, 0
      %p46 = por %p44, %p45
      %p47 = scmp.ne.s32.totalorder %s33, %s34
      %p48 = scmp.eq.s32.totalorder %s26, 1
      %p49 = por %p47, %p48
      %p51 = scmp.ne.s32.totalorder %s34, %s50
      %p52 = scmp.eq.s32.totalorder %s26, 0
      %p53 = por %p51, %p52
      %s55 = sadd.s32 %s54, 1
      %p58 = scmp.eq.s32.totalorder %s20, 1
      %p59 = scmp.ne.s32.totalorder %s54, %s56
      %p60 = scmp.eq.s32.totalorder %s20, 0
      %p61 = por %p59, %p60
      %p62 = scmp.ne.s32.totalorder %s54, %s56
      %p63 = scmp.eq.s32.totalorder %s25, 1
      %p64 = por %p62, %p63
      %p65 = scmp.ne.s32.totalorder %s56, %s57
      %p66 = scmp.eq.s32.totalorder %s25, 0
      %p67 = por %p65, %p66
      %p68 = scmp.ne.s32.totalorder %s56, %s57
      %p69 = scmp.eq.s32.totalorder %s26, 1
      %p70 = por %p68, %p69
      %p72 = scmp.ne.s32.totalorder %s57, %s71
      %p73 = scmp.eq.s32.totalorder %s26, 0
      %p74 = por %p72, %p73
      %s76 = sadd.s32 %s75, 1
      %p79 = scmp.eq.s32.totalorder %s20, 1
      %p80 = scmp.ne.s32.totalorder %s75, %s77
      %p81 = scmp.eq.s32.totalorder %s20, 0
      %p82 = por %p80, %p81
      %p83 = scmp.ne.s32.totalorder %s75, %s77
      %p84 = scmp.eq.s32.totalorder %s25, 1
      %p85 = por %p83, %p84
      %p86 = scmp.ne.s32.totalorder %s77, %s78
      %p87 = scmp.eq.s32.totalorder %s25, 0
      %p88 = por %p86, %p87
      %p89 = scmp.ne.s32.totalorder %s77, %s78
      %p90 = scmp.eq.s32.totalorder %s26, 1
      %p91 = por %p89, %p90
      %p93 = scmp.ne.s32.totalorder %s78, %s92
      %p94 = scmp.eq.s32.totalorder %s26, 0
      %p95 = por %p93, %p94
      %s97 = sadd.s32 %s96, 1
      %p100 = scmp.eq.s32.totalorder %s20, 1
      %p101 = scmp.ne.s32.totalorder %s96, %s98
      %p102 = scmp.eq.s32.totalorder %s20, 0
      %p103 = por %p101, %p102
      %p104 = scmp.ne.s32.totalorder %s96, %s98
      %p105 = scmp.eq.s32.totalorder %s25, 1
      %p106 = por %p104, %p105
      %p107 = scmp.ne.s32.totalorder %s98, %s99
      %p108 = scmp.eq.s32.totalorder %s25, 0
      %p109 = por %p107, %p108
      %p110 = scmp.ne.s32.totalorder %s98, %s99
      %p111 = scmp.eq.s32.totalorder %s26, 1
      %p112 = por %p110, %p111
      %p114 = scmp.ne.s32.totalorder %s99, %s113
      %p115 = scmp.eq.s32.totalorder %s26, 0
      %p116 = por %p114, %p115
      %s118 = sadd.s32 %s117, 1
      %p121 = scmp.eq.s32.totalorder %s20, 1
      %p122 = scmp.ne.s32.totalorder %s117, %s119
      %p123 = scmp.eq.s32.totalorder %s20, 0
      %p124 = por %p122, %p123
      %p125 = scmp.ne.s32.totalorder %s117, %s119
      %p126 = scmp.eq.s32.totalorder %s25, 1
      %p127 = por %p125, %p126
      %p128 = scmp.ne.s32.totalorder %s119, %s120
      %p129 = scmp.eq.s32.totalorder %s25, 0
      %p130 = por %p128, %p129
      %p131 = scmp.ne.s32.totalorder %s119, %s120
      %p132 = scmp.eq.s32.totalorder %s26, 1
      %p133 = por %p131, %p132
      %p135 = scmp.ne.s32.totalorder %s120, %s134
      %p136 = scmp.eq.s32.totalorder %s26, 0
      %p137 = por %p135, %p136
      %s139 = sadd.s32 %s138, 1
      %p142 = scmp.eq.s32.totalorder %s20, 1
      %p143 = scmp.ne.s32.totalorder %s138, %s140
      %p144 = scmp.eq.s32.totalorder %s20, 0
      %p145 = por %p143, %p144
      %p146 = scmp.ne.s32.totalorder %s138, %s140
      %p147 = scmp.eq.s32.totalorder %s25, 1
      %p148 = por %p146, %p147
      %p149 = scmp.ne.s32.totalorder %s140, %s141
      %p150 = scmp.eq.s32.totalorder %s25, 0
      %p151 = por %p149, %p150
      %p152 = scmp.ne.s32.totalorder %s140, %s141
      %p153 = scmp.eq.s32.totalorder %s26, 1
      %p154 = por %p152, %p153
      %p156 = scmp.ne.s32.totalorder %s141, %s155
      %p157 = scmp.eq.s32.totalorder %s26, 0
      %p158 = por %p156, %p157
      %s159 = ssub.s32 %s20, %s27
      %p160 = scmp.eq.s32.totalorder %s159, 0
      %s162 = sadd.s32 %s161, 1
      %s163 = scalar_select %p160, %s161, %s162
      %p166 = pneg %p160
      %p167 = scmp.eq.s32.totalorder %s20, 1
      %p168 = por %p166, %p167
      %p169 = scmp.ne.s32.totalorder %s161, %s164
      %p170 = scmp.eq.s32.totalorder %s20, 0
      %p171 = por %p169, %p170
      %p172 = scmp.ne.s32.totalorder %s161, %s164
      %p173 = scmp.eq.s32.totalorder %s25, 1
      %p174 = por %p172, %p173
      %p175 = scmp.ne.s32.totalorder %s164, %s165
      %p176 = scmp.eq.s32.totalorder %s25, 0
      %p177 = por %p175, %p176
      %p178 = scmp.ne.s32.totalorder %s164, %s165
      %p179 = scmp.eq.s32.totalorder %s26, 1
      %p180 = por %p178, %p179
      %p182 = scmp.ne.s32.totalorder %s165, %s181
      %p183 = scmp.eq.s32.totalorder %s26, 0
      %p184 = por %p182, %p183
      %p185 = scmp.le.s32.totalorder 1, %s20
      %p186 = scmp.lt.s32.totalorder %s20, 3
      %p187 = pnand %p185, %p186
      %p188 = pneg %p187
      // Predicated region
      $region9: #{tpu_custom_call.1} parent=5 // pred_check
        _
      $region10: #{tpu_custom_call.1} parent=5 // pred_check_branch
        %190 = sbr.rel (%p187) target = $region12
      $region11: #{tpu_custom_call.1} parent=5 // pred_region
        %s191 = ssub.s32 %s20, 1
        // Predicated region
        $region13: #{tpu_custom_call.1} parent=11 // pred_check
          %p192 = pneg %p67
        $region14: #{tpu_custom_call.1} parent=11 // pred_check_branch
          %194 = sbr.rel (%p192) target = $region16
        $region15: #{tpu_custom_call.1} parent=11 // pred_region
          %s196 = ssub.s32 2048, 2048
          %197 = vsyncadd [#allocation6], %s196
          %s198 = sshll.u32 [#allocation5], 4
          %s199 = int_to_ptr.vmem [resolvable:$true] %s198
          %204 = dma.hbm_to_vmem [thread:$0]  %s1, 2048, %s199, [#allocation6], 128, 128, 8
        $region16: #{tpu_custom_call.1} parent=11 // pred_fallthru
          _
        // Predicated region
        $region17: #{tpu_custom_call.1} parent=11 // pred_check
          %p205 = pneg %p88
        $region18: #{tpu_custom_call.1} parent=11 // pred_check_branch
          %207 = sbr.rel (%p205) target = $region20
        $region19: #{tpu_custom_call.1} parent=11 // pred_region
          _
        $region20: #{tpu_custom_call.1} parent=11 // pred_fallthru
          _
        // Predicated region
        $region21: #{tpu_custom_call.1} parent=11 // pred_check
          %p208 = pneg %p109
        $region22: #{tpu_custom_call.1} parent=11 // pred_check_branch
          %210 = sbr.rel (%p208) target = $region24
        $region23: #{tpu_custom_call.1} parent=11 // pred_region
          %s212 = ssub.s32 512, 512
          %213 = vsyncadd [#allocation6], %s212
          %s214 = sshll.u32 [#allocation7], 4
          %s215 = int_to_ptr.vmem [resolvable:$true] %s214
          %220 = dma.hbm_to_vmem [thread:$0]  %s3, 512, %s215, [#allocation6], 128, 128, 8
        $region24: #{tpu_custom_call.1} parent=11 // pred_fallthru
          _
        // Predicated region
        $region25: #{tpu_custom_call.1} parent=11 // pred_check
          %p221 = pneg %p130
        $region26: #{tpu_custom_call.1} parent=11 // pred_check_branch
          %223 = sbr.rel (%p221) target = $region28
        $region27: #{tpu_custom_call.1} parent=11 // pred_region
          _
        $region28: #{tpu_custom_call.1} parent=11 // pred_fallthru
          _
        // Predicated region
        $region29: #{tpu_custom_call.1} parent=11 // pred_check
          %p224 = pneg %p151
        $region30: #{tpu_custom_call.1} parent=11 // pred_check_branch
          %226 = sbr.rel (%p224) target = $region32
        $region31: #{tpu_custom_call.1} parent=11 // pred_region
          %s228 = ssub.s32 2048, 2048
          %229 = vsyncadd [#allocation9], %s228
          %s230 = sshll.u32 [#allocation8], 4
          %s231 = int_to_ptr.vmem [resolvable:$true] %s230
          %236 = dma.hbm_to_vmem [thread:$0]  %s5, 2048, %s231, [#allocation9], 128, 128, 8
        $region32: #{tpu_custom_call.1} parent=11 // pred_fallthru
          _
      $region12: #{tpu_custom_call.1} parent=5 // pred_fallthru
        _
      %p237 = scmp.lt.s32.totalorder %s20, 2
      // Predicated region
      $region33: #{tpu_custom_call.1} parent=5 // pred_check
        %p238 = pneg %p237
      $region34: #{tpu_custom_call.1} parent=5 // pred_check_branch
        %240 = sbr.rel (%p238) target = $region36
      $region35: #{tpu_custom_call.1} parent=5 // pred_region
        // Predicated region
        $region37: #{tpu_custom_call.1} parent=35 // pred_check
          %p241 = pneg %p40
        $region38: #{tpu_custom_call.1} parent=35 // pred_check_branch
          %243 = sbr.rel (%p241) target = $region40
        $region39: #{tpu_custom_call.1} parent=35 // pred_region
          %s244 = sand.u32 %s30, 1
          %s245 = scalar_lea.sflag [#allocation3], %s244
          %s246 = sand.u32 %s30, 1
          %s247 = smul.addr %s246, 8
          %s248 = scalar_lea.vmem [#allocation2], %s247
          %s250 = ssub.s32 128, 128
          %251 = vsyncadd %s245, %s250
          %s252 = smul.addr %s20, 128
          %s253 = scalar_lea.hbm %s0, %s252
          %s255 = sshll.u32 %s248, 4
          %s256 = int_to_ptr.vmem [resolvable:$true] %s255
          %258 = dma.hbm_to_vmem [thread:$0]  %s253, 128, %s256, %s245
        $region40: #{tpu_custom_call.1} parent=35 // pred_fallthru
          _
      $region36: #{tpu_custom_call.1} parent=5 // pred_fallthru
        _
      %p259 = scmp.le.s32.totalorder 1, %s20
      %p260 = scmp.lt.s32.totalorder %s20, 3
      %p261 = pnand %p259, %p260
      %p262 = pneg %p261
      // Predicated region
      $region41: #{tpu_custom_call.1} parent=5 // pred_check
        _
      $region42: #{tpu_custom_call.1} parent=5 // pred_check_branch
        %264 = sbr.rel (%p261) target = $region44
      $region43: #{tpu_custom_call.1} parent=5 // pred_region
        %s265 = ssub.s32 %s20, 1
        %s266 = sand.u32 %s33, 1
        %s267 = scalar_lea.sflag [#allocation3], %s266
        %s268 = sand.u32 %s33, 1
        %s269 = smul.addr %s268, 8
        %s270 = scalar_lea.vmem [#allocation2], %s269
        // Predicated region
        $region45: #{tpu_custom_call.1} parent=43 // pred_check
          %p271 = pneg %p46
        $region46: #{tpu_custom_call.1} parent=43 // pred_check_branch
          %273 = sbr.rel (%p271) target = $region48
        $region47: #{tpu_custom_call.1} parent=43 // pred_region
          %274 = dma.done %s267, 128
        $region48: #{tpu_custom_call.1} parent=43 // pred_fallthru
          _
        // Predicated region
        $region49: #{tpu_custom_call.1} parent=43 // pred_check
          %p275 = pneg %p67
        $region50: #{tpu_custom_call.1} parent=43 // pred_check_branch
          %277 = sbr.rel (%p275) target = $region52
        $region51: #{tpu_custom_call.1} parent=43 // pred_region
          %278 = dma.done [#allocation6], 2048
        $region52: #{tpu_custom_call.1} parent=43 // pred_fallthru
          _
        // Predicated region
        $region53: #{tpu_custom_call.1} parent=43 // pred_check
          %p279 = pneg %p109
        $region54: #{tpu_custom_call.1} parent=43 // pred_check_branch
          %281 = sbr.rel (%p279) target = $region56
        $region55: #{tpu_custom_call.1} parent=43 // pred_region
          %282 = dma.done [#allocation6], 512
        $region56: #{tpu_custom_call.1} parent=43 // pred_fallthru
          _
        // Predicated region
        $region57: #{tpu_custom_call.1} parent=43 // pred_check
          %p283 = pneg %p151
        $region58: #{tpu_custom_call.1} parent=43 // pred_check_branch
          %285 = sbr.rel (%p283) target = $region60
        $region59: #{tpu_custom_call.1} parent=43 // pred_region
          %286 = dma.done [#allocation9], 2048
        $region60: #{tpu_custom_call.1} parent=43 // pred_fallthru
          _
        %s287 = sand.u32 %s33, 1
        %s288 = scalar_lea.sflag [#allocation3], %s287
        %s289 = sand.u32 %s33, 1
        %s290 = smul.addr %s289, 8
        %s291 = scalar_lea.vmem [#allocation2], %s290
        %p292 = pneg %p46
        %p293 = pneg %p43
        %p294 = pneg %p67
        %p295 = pneg %p64
        %p296 = pneg %p88
        %p297 = pneg %p85
        %p298 = pneg %p109
        %p299 = pneg %p106
        %p300 = pneg %p130
        %p301 = pneg %p127
        %p302 = pneg %p151
        %p303 = pneg %p148
        %p304 = pneg %p177
        %p305 = pneg %p174
        %s306 = sand.u32 %s164, 1
        %s307 = scalar_lea.sflag [#allocation4], %s306
        %s308 = sand.u32 %s164, 1
        %s309 = smul.addr %s308, 8
        %s310 = scalar_lea.vmem [#allocation10], %s309
        %v311 = vld [vmem:[%s270] sm:$0xff]
        %v312 = vld [vmem:[#allocation5] sm:$0xff]
        %v313 = vld [vmem:[#allocation5 + $0x8] sm:$0xff]
        %v314 = vld [vmem:[#allocation5 + $0x10] sm:$0xff]
        %v315 = vld [vmem:[#allocation5 + $0x18] sm:$0xff]
        %v316 = vld [vmem:[#allocation5 + $0x20] sm:$0xff]
        %v317 = vld [vmem:[#allocation5 + $0x28] sm:$0xff]
        %v318 = vld [vmem:[#allocation5 + $0x30] sm:$0xff]
        %v319 = vld [vmem:[#allocation5 + $0x38] sm:$0xff]
        %v320 = vld [vmem:[#allocation5 + $0x40] sm:$0xff]
        %v321 = vld [vmem:[#allocation5 + $0x48] sm:$0xff]
        %v322 = vld [vmem:[#allocation5 + $0x50] sm:$0xff]
        %v323 = vld [vmem:[#allocation5 + $0x58] sm:$0xff]
        %v324 = vld [vmem:[#allocation5 + $0x60] sm:$0xff]
        %v325 = vld [vmem:[#allocation5 + $0x68] sm:$0xff]
        %v326 = vld [vmem:[#allocation5 + $0x70] sm:$0xff]
        %v327 = vld [vmem:[#allocation5 + $0x78] sm:$0xff]
        %v328 = vld [vmem:[%s2] sm:$0x1]
        %v330 = vlaneseq
        %v331 = vshrl.u32 %v330, 7
        %v332 = vsub.s32 0, %v331
        %v333 = vrot.slane %v328, %v332
        %335 = vmatprep.subr.mxu0 0.0
        %336 = vmatpush1.msra.mxu0 %v327
        %337 = vmatprep.subr.mxu0 0.0
        %338 = vmatpush1.msra.mxu0 %v326
        %339 = vmatprep.subr.mxu0 0.0
        %340 = vmatpush1.msra.mxu0 %v325
        %341 = vmatprep.subr.mxu0 0.0
        %342 = vmatpush1.msra.mxu0 %v324
        %343 = vmatprep.subr.mxu0 0.0
        %344 = vmatpush1.msra.mxu0 %v323
        %345 = vmatprep.subr.mxu0 0.0
        %346 = vmatpush1.msra.mxu0 %v322
        %347 = vmatprep.subr.mxu0 0.0
        %348 = vmatpush1.msra.mxu0 %v321
        %349 = vmatprep.subr.mxu0 0.0
        %350 = vmatpush1.msra.mxu0 %v320
        %351 = vmatprep.subr.mxu0 0.0
        %352 = vmatpush1.msra.mxu0 %v319
        %353 = vmatprep.subr.mxu0 0.0
        %354 = vmatpush1.msra.mxu0 %v318
        %355 = vmatprep.subr.mxu0 0.0
        %356 = vmatpush1.msra.mxu0 %v317
        %357 = vmatprep.subr.mxu0 0.0
        %358 = vmatpush1.msra.mxu0 %v316
        %359 = vmatprep.subr.mxu0 0.0
        %360 = vmatpush1.msra.mxu0 %v315
        %361 = vmatprep.subr.mxu0 0.0
        %362 = vmatpush1.msra.mxu0 %v314
        %363 = vmatprep.subr.mxu0 0.0
        %364 = vmatpush1.msra.mxu0 %v313
        %365 = vmatprep.subr.mxu0 0.0
        %366 = vmatpush1.msra.mxu0 %v312
        %367 = vmatprep.subr.mxu0 0.0
        %368 = vmatpush2.msra.mxu0 0.0
        %369 = vmatprep.subr.mxu0 0.0
        %370 = vmatpush2.msra.mxu0 0.0
        %371 = vmatprep.subr.mxu0 0.0
        %372 = vmatpush2.msra.mxu0 0.0
        %373 = vmatprep.subr.mxu0 0.0
        %374 = vmatpush2.msra.mxu0 0.0
        %375 = vmatprep.subr.mxu0 0.0
        %376 = vmatpush2.msra.mxu0 0.0
        %377 = vmatprep.subr.mxu0 0.0
        %378 = vmatpush2.msra.mxu0 0.0
        %379 = vmatprep.subr.mxu0 0.0
        %380 = vmatpush2.msra.mxu0 0.0
        %381 = vmatprep.subr.mxu0 0.0
        %382 = vmatpush2.msra.mxu0 0.0
        %383 = vmatprep.subr.mxu0 0.0
        %384 = vmatpush2.msra.mxu0 0.0
        %385 = vmatprep.subr.mxu0 0.0
        %386 = vmatpush2.msra.mxu0 0.0
        %387 = vmatprep.subr.mxu0 0.0
        %388 = vmatpush2.msra.mxu0 0.0
        %389 = vmatprep.subr.mxu0 0.0
        %390 = vmatpush2.msra.mxu0 0.0
        %391 = vmatprep.subr.mxu0 0.0
        %392 = vmatpush2.msra.mxu0 0.0
        %393 = vmatprep.subr.mxu0 0.0
        %394 = vmatpush2.msra.mxu0 0.0
        %395 = vmatprep.subr.mxu0 0.0
        %396 = vmatpush2.msra.mxu0 0.0
        %397 = vmatprep.subr.mxu0 0.0
        %398 = vmatpush2.msra.mxu0 0.0
        %399 = vmatprep.mubr.f32.mxu0 0.0
        %400 = vmatmul.mubr.f32.gmra.mxu0 %v311
        %v401 = vpop.f32.mrf.mxu0
        %v402 = vadd.f32 %v333, %v401
        %v403 = vpop.f32.mrf.mxu0
        %404 = vdwg.mxu0
        %406 = vrot.lane.b32.xlu0 %v402, 96
        %v407 = vpop.permute.xlu0 %406
        %vm408 = vcmask 64512
        %v409 = vsel %vm408, %v402, 0
        %v411 = vsel %vm408, %v407, 0
        %413 = vmatprep.subr.mxu0 0.0
        %414 = vmatpush1.xpose.msra.mxu0 0.0
        %415 = vmatprep.subr.mxu0 0.0
        %416 = vmatpush1.xpose.msra.mxu0 0.0
        %417 = vmatprep.subr.mxu0 0.0
        %418 = vmatpush1.xpose.msra.mxu0 0.0
        %419 = vmatprep.subr.mxu0 0.0
        %420 = vmatpush1.xpose.msra.mxu0 0.0
        %421 = vmatprep.subr.mxu0 0.0
        %422 = vmatpush1.xpose.msra.mxu0 0.0
        %423 = vmatprep.subr.mxu0 0.0
        %424 = vmatpush1.xpose.msra.mxu0 0.0
        %425 = vmatprep.subr.mxu0 0.0
        %426 = vmatpush1.xpose.msra.mxu0 0.0
        %427 = vmatprep.subr.mxu0 0.0
        %428 = vmatpush1.xpose.msra.mxu0 0.0
        %429 = vmatprep.subr.mxu0 0.0
        %430 = vmatpush1.xpose.msra.mxu0 0.0
        %431 = vmatprep.subr.mxu0 0.0
        %432 = vmatpush1.xpose.msra.mxu0 0.0
        %433 = vmatprep.subr.mxu0 0.0
        %434 = vmatpush1.xpose.msra.mxu0 0.0
        %435 = vmatprep.subr.mxu0 0.0
        %436 = vmatpush1.xpose.msra.mxu0 0.0
        %437 = vmatprep.subr.mxu0 0.0
        %438 = vmatpush1.xpose.msra.mxu0 0.0
        %439 = vmatprep.subr.mxu0 0.0
        %440 = vmatpush1.xpose.msra.mxu0 0.0
        %441 = vmatprep.subr.mxu0 0.0
        %442 = vmatpush1.xpose.msra.mxu0 0.0
        %443 = vmatprep.subr.mxu0 0.0
        %444 = vmatpush1.xpose.msra.mxu0 %v411
        %445 = vmatprep.subr.mxu0 0.0
        %446 = vmatpush2.xpose.msra.mxu0 0.0
        %447 = vmatprep.subr.mxu0 0.0
        %448 = vmatpush2.xpose.msra.mxu0 0.0
        %449 = vmatprep.subr.mxu0 0.0
        %450 = vmatpush2.xpose.msra.mxu0 0.0
        %451 = vmatprep.subr.mxu0 0.0
        %452 = vmatpush2.xpose.msra.mxu0 0.0
        %453 = vmatprep.subr.mxu0 0.0
        %454 = vmatpush2.xpose.msra.mxu0 0.0
        %455 = vmatprep.subr.mxu0 0.0
        %456 = vmatpush2.xpose.msra.mxu0 0.0
        %457 = vmatprep.subr.mxu0 0.0
        %458 = vmatpush2.xpose.msra.mxu0 0.0
        %459 = vmatprep.subr.mxu0 0.0
        %460 = vmatpush2.xpose.msra.mxu0 0.0
        %461 = vmatprep.subr.mxu0 0.0
        %462 = vmatpush2.xpose.msra.mxu0 0.0
        %463 = vmatprep.subr.mxu0 0.0
        %464 = vmatpush2.xpose.msra.mxu0 0.0
        %465 = vmatprep.subr.mxu0 0.0
        %466 = vmatpush2.xpose.msra.mxu0 0.0
        %467 = vmatprep.subr.mxu0 0.0
        %468 = vmatpush2.xpose.msra.mxu0 0.0
        %469 = vmatprep.subr.mxu0 0.0
        %470 = vmatpush2.xpose.msra.mxu0 0.0
        %471 = vmatprep.subr.mxu0 0.0
        %472 = vmatpush2.xpose.msra.mxu0 0.0
        %473 = vmatprep.subr.mxu0 0.0
        %474 = vmatpush2.xpose.msra.mxu0 0.0
        %475 = vmatprep.subr.mxu0 0.0
        %476 = vmatpush2.xpose.msra.mxu0 0.0
        %477 = vmatprep.mubr.f32.mxu0 0.0
        %478 = vmatmul.mubr.f32.gmra.mxu0 %v409
        %v479 = vpop.f32.mrf.mxu0
        %v480 = vadd.f32 0.0, %v479
        %v481 = vpop.f32.mrf.mxu0
        %482 = vdwg.mxu0
        %v483 = vsel %vm408, %v480, -inf
        %484 = vmax.xlane.f32.xlu0 %v483
        %v485 = vpop.xlane.xlu0 %484
        %v486 = vsub.f32 %v480, %v485
        %v487 = vmul.f32 %v486, 1.442695
        %v488 = vpow.pop %v487
        %v489 = vsel %vm408, %v488, 0.0
        %490 = vadd.xlane.f32.xlu0 %v489
        %v491 = vpop.xlane.xlu0 %490
        %v492 = vrcp.pop %v491
        %v493 = vmul.f32 %v488, %v492
        %494 = vrot.lane.b32.xlu0 %v402, 64
        %v495 = vpop.permute.xlu0 %494
        %v498 = vsel %vm408, %v493, 0
        %500 = vmatprep.subr.mxu0 0.0
        %501 = vmatpush1.msra.mxu0 0.0
        %502 = vmatprep.subr.mxu0 0.0
        %503 = vmatpush1.msra.mxu0 0.0
        %504 = vmatprep.subr.mxu0 0.0
        %505 = vmatpush1.msra.mxu0 0.0
        %506 = vmatprep.subr.mxu0 0.0
        %507 = vmatpush1.msra.mxu0 0.0
        %508 = vmatprep.subr.mxu0 0.0
        %509 = vmatpush1.msra.mxu0 0.0
        %510 = vmatprep.subr.mxu0 0.0
        %511 = vmatpush1.msra.mxu0 0.0
        %512 = vmatprep.subr.mxu0 0.0
        %513 = vmatpush1.msra.mxu0 0.0
        %514 = vmatprep.subr.mxu0 0.0
        %515 = vmatpush1.msra.mxu0 0.0
        %516 = vmatprep.subr.mxu0 0.0
        %517 = vmatpush1.msra.mxu0 0.0
        %518 = vmatprep.subr.mxu0 0.0
        %519 = vmatpush1.msra.mxu0 0.0
        %520 = vmatprep.subr.mxu0 0.0
        %521 = vmatpush1.msra.mxu0 0.0
        %522 = vmatprep.subr.mxu0 0.0
        %523 = vmatpush1.msra.mxu0 0.0
        %524 = vmatprep.subr.mxu0 0.0
        %525 = vmatpush1.msra.mxu0 0.0
        %526 = vmatprep.subr.mxu0 0.0
        %527 = vmatpush1.msra.mxu0 0.0
        %528 = vmatprep.subr.mxu0 0.0
        %529 = vmatpush1.msra.mxu0 0.0
        %530 = vmatprep.subr.mxu0 0.0
        %531 = vmatpush1.msra.mxu0 %v495
        %532 = vmatprep.subr.mxu0 0.0
        %533 = vmatpush2.msra.mxu0 0.0
        %534 = vmatprep.subr.mxu0 0.0
        %535 = vmatpush2.msra.mxu0 0.0
        %536 = vmatprep.subr.mxu0 0.0
        %537 = vmatpush2.msra.mxu0 0.0
        %538 = vmatprep.subr.mxu0 0.0
        %539 = vmatpush2.msra.mxu0 0.0
        %540 = vmatprep.subr.mxu0 0.0
        %541 = vmatpush2.msra.mxu0 0.0
        %542 = vmatprep.subr.mxu0 0.0
        %543 = vmatpush2.msra.mxu0 0.0
        %544 = vmatprep.subr.mxu0 0.0
        %545 = vmatpush2.msra.mxu0 0.0
        %546 = vmatprep.subr.mxu0 0.0
        %547 = vmatpush2.msra.mxu0 0.0
        %548 = vmatprep.subr.mxu0 0.0
        %549 = vmatpush2.msra.mxu0 0.0
        %550 = vmatprep.subr.mxu0 0.0
        %551 = vmatpush2.msra.mxu0 0.0
        %552 = vmatprep.subr.mxu0 0.0
        %553 = vmatpush2.msra.mxu0 0.0
        %554 = vmatprep.subr.mxu0 0.0
        %555 = vmatpush2.msra.mxu0 0.0
        %556 = vmatprep.subr.mxu0 0.0
        %557 = vmatpush2.msra.mxu0 0.0
        %558 = vmatprep.subr.mxu0 0.0
        %559 = vmatpush2.msra.mxu0 0.0
        %560 = vmatprep.subr.mxu0 0.0
        %561 = vmatpush2.msra.mxu0 0.0
        %562 = vmatprep.subr.mxu0 0.0
        %563 = vmatpush2.msra.mxu0 0.0
        %564 = vmatprep.mubr.f32.mxu0 0.0
        %565 = vmatmul.mubr.f32.gmra.mxu0 %v498
        %v566 = vpop.f32.mrf.mxu0
        %v567 = vadd.f32 0.0, %v566
        %v568 = vpop.f32.mrf.mxu0
        %569 = vdwg.mxu0
        %570 = vrot.lane.b32.xlu0 %v402, 120
        %v571 = vpop.permute.xlu0 %570
        %572 = vrot.lane.b32.xlu0 %v402, 88
        %v573 = vpop.permute.xlu0 %572
        %v574 = vsel %vm408, %v571, 0
        %v576 = vsel %vm408, %v573, 0
        %578 = vmatprep.subr.mxu0 0.0
        %579 = vmatpush1.xpose.msra.mxu0 0.0
        %580 = vmatprep.subr.mxu0 0.0
        %581 = vmatpush1.xpose.msra.mxu0 0.0
        %582 = vmatprep.subr.mxu0 0.0
        %583 = vmatpush1.xpose.msra.mxu0 0.0
        %584 = vmatprep.subr.mxu0 0.0
        %585 = vmatpush1.xpose.msra.mxu0 0.0
        %586 = vmatprep.subr.mxu0 0.0
        %587 = vmatpush1.xpose.msra.mxu0 0.0
        %588 = vmatprep.subr.mxu0 0.0
        %589 = vmatpush1.xpose.msra.mxu0 0.0
        %590 = vmatprep.subr.mxu0 0.0
        %591 = vmatpush1.xpose.msra.mxu0 0.0
        %592 = vmatprep.subr.mxu0 0.0
        %593 = vmatpush1.xpose.msra.mxu0 0.0
        %594 = vmatprep.subr.mxu0 0.0
        %595 = vmatpush1.xpose.msra.mxu0 0.0
        %596 = vmatprep.subr.mxu0 0.0
        %597 = vmatpush1.xpose.msra.mxu0 0.0
        %598 = vmatprep.subr.mxu0 0.0
        %599 = vmatpush1.xpose.msra.mxu0 0.0
        %600 = vmatprep.subr.mxu0 0.0
        %601 = vmatpush1.xpose.msra.mxu0 0.0
        %602 = vmatprep.subr.mxu0 0.0
        %603 = vmatpush1.xpose.msra.mxu0 0.0
        %604 = vmatprep.subr.mxu0 0.0
        %605 = vmatpush1.xpose.msra.mxu0 0.0
        %606 = vmatprep.subr.mxu0 0.0
        %607 = vmatpush1.xpose.msra.mxu0 0.0
        %608 = vmatprep.subr.mxu0 0.0
        %609 = vmatpush1.xpose.msra.mxu0 %v576
        %610 = vmatprep.subr.mxu0 0.0
        %611 = vmatpush2.xpose.msra.mxu0 0.0
        %612 = vmatprep.subr.mxu0 0.0
        %613 = vmatpush2.xpose.msra.mxu0 0.0
        %614 = vmatprep.subr.mxu0 0.0
        %615 = vmatpush2.xpose.msra.mxu0 0.0
        %616 = vmatprep.subr.mxu0 0.0
        %617 = vmatpush2.xpose.msra.mxu0 0.0
        %618 = vmatprep.subr.mxu0 0.0
        %619 = vmatpush2.xpose.msra.mxu0 0.0
        %620 = vmatprep.subr.mxu0 0.0
        %621 = vmatpush2.xpose.msra.mxu0 0.0
        %622 = vmatprep.subr.mxu0 0.0
        %623 = vmatpush2.xpose.msra.mxu0 0.0
        %624 = vmatprep.subr.mxu0 0.0
        %625 = vmatpush2.xpose.msra.mxu0 0.0
        %626 = vmatprep.subr.mxu0 0.0
        %627 = vmatpush2.xpose.msra.mxu0 0.0
        %628 = vmatprep.subr.mxu0 0.0
        %629 = vmatpush2.xpose.msra.mxu0 0.0
        %630 = vmatprep.subr.mxu0 0.0
        %631 = vmatpush2.xpose.msra.mxu0 0.0
        %632 = vmatprep.subr.mxu0 0.0
        %633 = vmatpush2.xpose.msra.mxu0 0.0
        %634 = vmatprep.subr.mxu0 0.0
        %635 = vmatpush2.xpose.msra.mxu0 0.0
        %636 = vmatprep.subr.mxu0 0.0
        %637 = vmatpush2.xpose.msra.mxu0 0.0
        %638 = vmatprep.subr.mxu0 0.0
        %639 = vmatpush2.xpose.msra.mxu0 0.0
        %640 = vmatprep.subr.mxu0 0.0
        %641 = vmatpush2.xpose.msra.mxu0 0.0
        %642 = vmatprep.mubr.f32.mxu0 0.0
        %643 = vmatmul.mubr.f32.gmra.mxu0 %v574
        %v644 = vpop.f32.mrf.mxu0
        %v645 = vadd.f32 0.0, %v644
        %v646 = vpop.f32.mrf.mxu0
        %647 = vdwg.mxu0
        %v648 = vsel %vm408, %v645, -inf
        %649 = vmax.xlane.f32.xlu0 %v648
        %v650 = vpop.xlane.xlu0 %649
        %v651 = vsub.f32 %v645, %v650
        %v652 = vmul.f32 %v651, 1.442695
        %v653 = vpow.pop %v652
        %v654 = vsel %vm408, %v653, 0.0
        %655 = vadd.xlane.f32.xlu0 %v654
        %v656 = vpop.xlane.xlu0 %655
        %v657 = vrcp.pop %v656
        %v658 = vmul.f32 %v653, %v657
        %659 = vrot.lane.b32.xlu0 %v402, 56
        %v660 = vpop.permute.xlu0 %659
        %v663 = vsel %vm408, %v658, 0
        %665 = vmatprep.subr.mxu0 0.0
        %666 = vmatpush1.msra.mxu0 0.0
        %667 = vmatprep.subr.mxu0 0.0
        %668 = vmatpush1.msra.mxu0 0.0
        %669 = vmatprep.subr.mxu0 0.0
        %670 = vmatpush1.msra.mxu0 0.0
        %671 = vmatprep.subr.mxu0 0.0
        %672 = vmatpush1.msra.mxu0 0.0
        %673 = vmatprep.subr.mxu0 0.0
        %674 = vmatpush1.msra.mxu0 0.0
        %675 = vmatprep.subr.mxu0 0.0
        %676 = vmatpush1.msra.mxu0 0.0
        %677 = vmatprep.subr.mxu0 0.0
        %678 = vmatpush1.msra.mxu0 0.0
        %679 = vmatprep.subr.mxu0 0.0
        %680 = vmatpush1.msra.mxu0 0.0
        %681 = vmatprep.subr.mxu0 0.0
        %682 = vmatpush1.msra.mxu0 0.0
        %683 = vmatprep.subr.mxu0 0.0
        %684 = vmatpush1.msra.mxu0 0.0
        %685 = vmatprep.subr.mxu0 0.0
        %686 = vmatpush1.msra.mxu0 0.0
        %687 = vmatprep.subr.mxu0 0.0
        %688 = vmatpush1.msra.mxu0 0.0
        %689 = vmatprep.subr.mxu0 0.0
        %690 = vmatpush1.msra.mxu0 0.0
        %691 = vmatprep.subr.mxu0 0.0
        %692 = vmatpush1.msra.mxu0 0.0
        %693 = vmatprep.subr.mxu0 0.0
        %694 = vmatpush1.msra.mxu0 0.0
        %695 = vmatprep.subr.mxu0 0.0
        %696 = vmatpush1.msra.mxu0 %v660
        %697 = vmatprep.subr.mxu0 0.0
        %698 = vmatpush2.msra.mxu0 0.0
        %699 = vmatprep.subr.mxu0 0.0
        %700 = vmatpush2.msra.mxu0 0.0
        %701 = vmatprep.subr.mxu0 0.0
        %702 = vmatpush2.msra.mxu0 0.0
        %703 = vmatprep.subr.mxu0 0.0
        %704 = vmatpush2.msra.mxu0 0.0
        %705 = vmatprep.subr.mxu0 0.0
        %706 = vmatpush2.msra.mxu0 0.0
        %707 = vmatprep.subr.mxu0 0.0
        %708 = vmatpush2.msra.mxu0 0.0
        %709 = vmatprep.subr.mxu0 0.0
        %710 = vmatpush2.msra.mxu0 0.0
        %711 = vmatprep.subr.mxu0 0.0
        %712 = vmatpush2.msra.mxu0 0.0
        %713 = vmatprep.subr.mxu0 0.0
        %714 = vmatpush2.msra.mxu0 0.0
        %715 = vmatprep.subr.mxu0 0.0
        %716 = vmatpush2.msra.mxu0 0.0
        %717 = vmatprep.subr.mxu0 0.0
        %718 = vmatpush2.msra.mxu0 0.0
        %719 = vmatprep.subr.mxu0 0.0
        %720 = vmatpush2.msra.mxu0 0.0
        %721 = vmatprep.subr.mxu0 0.0
        %722 = vmatpush2.msra.mxu0 0.0
        %723 = vmatprep.subr.mxu0 0.0
        %724 = vmatpush2.msra.mxu0 0.0
        %725 = vmatprep.subr.mxu0 0.0
        %726 = vmatpush2.msra.mxu0 0.0
        %727 = vmatprep.subr.mxu0 0.0
        %728 = vmatpush2.msra.mxu0 0.0
        %729 = vmatprep.mubr.f32.mxu0 0.0
        %730 = vmatmul.mubr.f32.gmra.mxu0 %v663
        %v731 = vpop.f32.mrf.mxu0
        %v732 = vadd.f32 0.0, %v731
        %v733 = vpop.f32.mrf.mxu0
        %734 = vdwg.mxu0
        %735 = vrot.lane.b32.xlu0 %v402, 112
        %v736 = vpop.permute.xlu0 %735
        %737 = vrot.lane.b32.xlu0 %v402, 80
        %v738 = vpop.permute.xlu0 %737
        %v739 = vsel %vm408, %v736, 0
        %v741 = vsel %vm408, %v738, 0
        %743 = vmatprep.subr.mxu0 0.0
        %744 = vmatpush1.xpose.msra.mxu0 0.0
        %745 = vmatprep.subr.mxu0 0.0
        %746 = vmatpush1.xpose.msra.mxu0 0.0
        %747 = vmatprep.subr.mxu0 0.0
        %748 = vmatpush1.xpose.msra.mxu0 0.0
        %749 = vmatprep.subr.mxu0 0.0
        %750 = vmatpush1.xpose.msra.mxu0 0.0
        %751 = vmatprep.subr.mxu0 0.0
        %752 = vmatpush1.xpose.msra.mxu0 0.0
        %753 = vmatprep.subr.mxu0 0.0
        %754 = vmatpush1.xpose.msra.mxu0 0.0
        %755 = vmatprep.subr.mxu0 0.0
        %756 = vmatpush1.xpose.msra.mxu0 0.0
        %757 = vmatprep.subr.mxu0 0.0
        %758 = vmatpush1.xpose.msra.mxu0 0.0
        %759 = vmatprep.subr.mxu0 0.0
        %760 = vmatpush1.xpose.msra.mxu0 0.0
        %761 = vmatprep.subr.mxu0 0.0
        %762 = vmatpush1.xpose.msra.mxu0 0.0
        %763 = vmatprep.subr.mxu0 0.0
        %764 = vmatpush1.xpose.msra.mxu0 0.0
        %765 = vmatprep.subr.mxu0 0.0
        %766 = vmatpush1.xpose.msra.mxu0 0.0
        %767 = vmatprep.subr.mxu0 0.0
        %768 = vmatpush1.xpose.msra.mxu0 0.0
        %769 = vmatprep.subr.mxu0 0.0
        %770 = vmatpush1.xpose.msra.mxu0 0.0
        %771 = vmatprep.subr.mxu0 0.0
        %772 = vmatpush1.xpose.msra.mxu0 0.0
        %773 = vmatprep.subr.mxu0 0.0
        %774 = vmatpush1.xpose.msra.mxu0 %v741
        %775 = vmatprep.subr.mxu0 0.0
        %776 = vmatpush2.xpose.msra.mxu0 0.0
        %777 = vmatprep.subr.mxu0 0.0
        %778 = vmatpush2.xpose.msra.mxu0 0.0
        %779 = vmatprep.subr.mxu0 0.0
        %780 = vmatpush2.xpose.msra.mxu0 0.0
        %781 = vmatprep.subr.mxu0 0.0
        %782 = vmatpush2.xpose.msra.mxu0 0.0
        %783 = vmatprep.subr.mxu0 0.0
        %784 = vmatpush2.xpose.msra.mxu0 0.0
        %785 = vmatprep.subr.mxu0 0.0
        %786 = vmatpush2.xpose.msra.mxu0 0.0
        %787 = vmatprep.subr.mxu0 0.0
        %788 = vmatpush2.xpose.msra.mxu0 0.0
        %789 = vmatprep.subr.mxu0 0.0
        %790 = vmatpush2.xpose.msra.mxu0 0.0
        %791 = vmatprep.subr.mxu0 0.0
        %792 = vmatpush2.xpose.msra.mxu0 0.0
        %793 = vmatprep.subr.mxu0 0.0
        %794 = vmatpush2.xpose.msra.mxu0 0.0
        %795 = vmatprep.subr.mxu0 0.0
        %796 = vmatpush2.xpose.msra.mxu0 0.0
        %797 = vmatprep.subr.mxu0 0.0
        %798 = vmatpush2.xpose.msra.mxu0 0.0
        %799 = vmatprep.subr.mxu0 0.0
        %800 = vmatpush2.xpose.msra.mxu0 0.0
        %801 = vmatprep.subr.mxu0 0.0
        %802 = vmatpush2.xpose.msra.mxu0 0.0
        %803 = vmatprep.subr.mxu0 0.0
        %804 = vmatpush2.xpose.msra.mxu0 0.0
        %805 = vmatprep.subr.mxu0 0.0
        %806 = vmatpush2.xpose.msra.mxu0 0.0
        %807 = vmatprep.mubr.f32.mxu0 0.0
        %808 = vmatmul.mubr.f32.gmra.mxu0 %v739
        %v809 = vpop.f32.mrf.mxu0
        %v810 = vadd.f32 0.0, %v809
        %v811 = vpop.f32.mrf.mxu0
        %812 = vdwg.mxu0
        %v813 = vsel %vm408, %v810, -inf
        %814 = vmax.xlane.f32.xlu0 %v813
        %v815 = vpop.xlane.xlu0 %814
        %v816 = vsub.f32 %v810, %v815
        %v817 = vmul.f32 %v816, 1.442695
        %v818 = vpow.pop %v817
        %v819 = vsel %vm408, %v818, 0.0
        %820 = vadd.xlane.f32.xlu0 %v819
        %v821 = vpop.xlane.xlu0 %820
        %v822 = vrcp.pop %v821
        %v823 = vmul.f32 %v818, %v822
        %824 = vrot.lane.b32.xlu0 %v402, 48
        %v825 = vpop.permute.xlu0 %824
        %v828 = vsel %vm408, %v823, 0
        %830 = vmatprep.subr.mxu0 0.0
        %831 = vmatpush1.msra.mxu0 0.0
        %832 = vmatprep.subr.mxu0 0.0
        %833 = vmatpush1.msra.mxu0 0.0
        %834 = vmatprep.subr.mxu0 0.0
        %835 = vmatpush1.msra.mxu0 0.0
        %836 = vmatprep.subr.mxu0 0.0
        %837 = vmatpush1.msra.mxu0 0.0
        %838 = vmatprep.subr.mxu0 0.0
        %839 = vmatpush1.msra.mxu0 0.0
        %840 = vmatprep.subr.mxu0 0.0
        %841 = vmatpush1.msra.mxu0 0.0
        %842 = vmatprep.subr.mxu0 0.0
        %843 = vmatpush1.msra.mxu0 0.0
        %844 = vmatprep.subr.mxu0 0.0
        %845 = vmatpush1.msra.mxu0 0.0
        %846 = vmatprep.subr.mxu0 0.0
        %847 = vmatpush1.msra.mxu0 0.0
        %848 = vmatprep.subr.mxu0 0.0
        %849 = vmatpush1.msra.mxu0 0.0
        %850 = vmatprep.subr.mxu0 0.0
        %851 = vmatpush1.msra.mxu0 0.0
        %852 = vmatprep.subr.mxu0 0.0
        %853 = vmatpush1.msra.mxu0 0.0
        %854 = vmatprep.subr.mxu0 0.0
        %855 = vmatpush1.msra.mxu0 0.0
        %856 = vmatprep.subr.mxu0 0.0
        %857 = vmatpush1.msra.mxu0 0.0
        %858 = vmatprep.subr.mxu0 0.0
        %859 = vmatpush1.msra.mxu0 0.0
        %860 = vmatprep.subr.mxu0 0.0
        %861 = vmatpush1.msra.mxu0 %v825
        %862 = vmatprep.subr.mxu0 0.0
        %863 = vmatpush2.msra.mxu0 0.0
        %864 = vmatprep.subr.mxu0 0.0
        %865 = vmatpush2.msra.mxu0 0.0
        %866 = vmatprep.subr.mxu0 0.0
        %867 = vmatpush2.msra.mxu0 0.0
        %868 = vmatprep.subr.mxu0 0.0
        %869 = vmatpush2.msra.mxu0 0.0
        %870 = vmatprep.subr.mxu0 0.0
        %871 = vmatpush2.msra.mxu0 0.0
        %872 = vmatprep.subr.mxu0 0.0
        %873 = vmatpush2.msra.mxu0 0.0
        %874 = vmatprep.subr.mxu0 0.0
        %875 = vmatpush2.msra.mxu0 0.0
        %876 = vmatprep.subr.mxu0 0.0
        %877 = vmatpush2.msra.mxu0 0.0
        %878 = vmatprep.subr.mxu0 0.0
        %879 = vmatpush2.msra.mxu0 0.0
        %880 = vmatprep.subr.mxu0 0.0
        %881 = vmatpush2.msra.mxu0 0.0
        %882 = vmatprep.subr.mxu0 0.0
        %883 = vmatpush2.msra.mxu0 0.0
        %884 = vmatprep.subr.mxu0 0.0
        %885 = vmatpush2.msra.mxu0 0.0
        %886 = vmatprep.subr.mxu0 0.0
        %887 = vmatpush2.msra.mxu0 0.0
        %888 = vmatprep.subr.mxu0 0.0
        %889 = vmatpush2.msra.mxu0 0.0
        %890 = vmatprep.subr.mxu0 0.0
        %891 = vmatpush2.msra.mxu0 0.0
        %892 = vmatprep.subr.mxu0 0.0
        %893 = vmatpush2.msra.mxu0 0.0
        %894 = vmatprep.mubr.f32.mxu0 0.0
        %895 = vmatmul.mubr.f32.gmra.mxu0 %v828
        %v896 = vpop.f32.mrf.mxu0
        %v897 = vadd.f32 0.0, %v896
        %v898 = vpop.f32.mrf.mxu0
        %899 = vdwg.mxu0
        %900 = vrot.lane.b32.xlu0 %v402, 104
        %v901 = vpop.permute.xlu0 %900
        %902 = vrot.lane.b32.xlu0 %v402, 72
        %v903 = vpop.permute.xlu0 %902
        %v904 = vsel %vm408, %v901, 0
        %v906 = vsel %vm408, %v903, 0
        %908 = vmatprep.subr.mxu0 0.0
        %909 = vmatpush1.xpose.msra.mxu0 0.0
        %910 = vmatprep.subr.mxu0 0.0
        %911 = vmatpush1.xpose.msra.mxu0 0.0
        %912 = vmatprep.subr.mxu0 0.0
        %913 = vmatpush1.xpose.msra.mxu0 0.0
        %914 = vmatprep.subr.mxu0 0.0
        %915 = vmatpush1.xpose.msra.mxu0 0.0
        %916 = vmatprep.subr.mxu0 0.0
        %917 = vmatpush1.xpose.msra.mxu0 0.0
        %918 = vmatprep.subr.mxu0 0.0
        %919 = vmatpush1.xpose.msra.mxu0 0.0
        %920 = vmatprep.subr.mxu0 0.0
        %921 = vmatpush1.xpose.msra.mxu0 0.0
        %922 = vmatprep.subr.mxu0 0.0
        %923 = vmatpush1.xpose.msra.mxu0 0.0
        %924 = vmatprep.subr.mxu0 0.0
        %925 = vmatpush1.xpose.msra.mxu0 0.0
        %926 = vmatprep.subr.mxu0 0.0
        %927 = vmatpush1.xpose.msra.mxu0 0.0
        %928 = vmatprep.subr.mxu0 0.0
        %929 = vmatpush1.xpose.msra.mxu0 0.0
        %930 = vmatprep.subr.mxu0 0.0
        %931 = vmatpush1.xpose.msra.mxu0 0.0
        %932 = vmatprep.subr.mxu0 0.0
        %933 = vmatpush1.xpose.msra.mxu0 0.0
        %934 = vmatprep.subr.mxu0 0.0
        %935 = vmatpush1.xpose.msra.mxu0 0.0
        %936 = vmatprep.subr.mxu0 0.0
        %937 = vmatpush1.xpose.msra.mxu0 0.0
        %938 = vmatprep.subr.mxu0 0.0
        %939 = vmatpush1.xpose.msra.mxu0 %v906
        %940 = vmatprep.subr.mxu0 0.0
        %941 = vmatpush2.xpose.msra.mxu0 0.0
        %942 = vmatprep.subr.mxu0 0.0
        %943 = vmatpush2.xpose.msra.mxu0 0.0
        %944 = vmatprep.subr.mxu0 0.0
        %945 = vmatpush2.xpose.msra.mxu0 0.0
        %946 = vmatprep.subr.mxu0 0.0
        %947 = vmatpush2.xpose.msra.mxu0 0.0
        %948 = vmatprep.subr.mxu0 0.0
        %949 = vmatpush2.xpose.msra.mxu0 0.0
        %950 = vmatprep.subr.mxu0 0.0
        %951 = vmatpush2.xpose.msra.mxu0 0.0
        %952 = vmatprep.subr.mxu0 0.0
        %953 = vmatpush2.xpose.msra.mxu0 0.0
        %954 = vmatprep.subr.mxu0 0.0
        %955 = vmatpush2.xpose.msra.mxu0 0.0
        %956 = vmatprep.subr.mxu0 0.0
        %957 = vmatpush2.xpose.msra.mxu0 0.0
        %958 = vmatprep.subr.mxu0 0.0
        %959 = vmatpush2.xpose.msra.mxu0 0.0
        %960 = vmatprep.subr.mxu0 0.0
        %961 = vmatpush2.xpose.msra.mxu0 0.0
        %962 = vmatprep.subr.mxu0 0.0
        %963 = vmatpush2.xpose.msra.mxu0 0.0
        %964 = vmatprep.subr.mxu0 0.0
        %965 = vmatpush2.xpose.msra.mxu0 0.0
        %966 = vmatprep.subr.mxu0 0.0
        %967 = vmatpush2.xpose.msra.mxu0 0.0
        %968 = vmatprep.subr.mxu0 0.0
        %969 = vmatpush2.xpose.msra.mxu0 0.0
        %970 = vmatprep.subr.mxu0 0.0
        %971 = vmatpush2.xpose.msra.mxu0 0.0
        %972 = vmatprep.mubr.f32.mxu0 0.0
        %973 = vmatmul.mubr.f32.gmra.mxu0 %v904
        %v974 = vpop.f32.mrf.mxu0
        %v975 = vadd.f32 0.0, %v974
        %v976 = vpop.f32.mrf.mxu0
        %977 = vdwg.mxu0
        %v978 = vsel %vm408, %v975, -inf
        %979 = vmax.xlane.f32.xlu0 %v978
        %v980 = vpop.xlane.xlu0 %979
        %v981 = vsub.f32 %v975, %v980
        %v982 = vmul.f32 %v981, 1.442695
        %v983 = vpow.pop %v982
        %v984 = vsel %vm408, %v983, 0.0
        %985 = vadd.xlane.f32.xlu0 %v984
        %v986 = vpop.xlane.xlu0 %985
        %v987 = vrcp.pop %v986
        %v988 = vmul.f32 %v983, %v987
        %989 = vrot.lane.b32.xlu0 %v402, 40
        %v990 = vpop.permute.xlu0 %989
        %v993 = vsel %vm408, %v988, 0
        %995 = vmatprep.subr.mxu0 0.0
        %996 = vmatpush1.msra.mxu0 0.0
        %997 = vmatprep.subr.mxu0 0.0
        %998 = vmatpush1.msra.mxu0 0.0
        %999 = vmatprep.subr.mxu0 0.0
        %1000 = vmatpush1.msra.mxu0 0.0
        %1001 = vmatprep.subr.mxu0 0.0
        %1002 = vmatpush1.msra.mxu0 0.0
        %1003 = vmatprep.subr.mxu0 0.0
        %1004 = vmatpush1.msra.mxu0 0.0
        %1005 = vmatprep.subr.mxu0 0.0
        %1006 = vmatpush1.msra.mxu0 0.0
        %1007 = vmatprep.subr.mxu0 0.0
        %1008 = vmatpush1.msra.mxu0 0.0
        %1009 = vmatprep.subr.mxu0 0.0
        %1010 = vmatpush1.msra.mxu0 0.0
        %1011 = vmatprep.subr.mxu0 0.0
        %1012 = vmatpush1.msra.mxu0 0.0
        %1013 = vmatprep.subr.mxu0 0.0
        %1014 = vmatpush1.msra.mxu0 0.0
        %1015 = vmatprep.subr.mxu0 0.0
        %1016 = vmatpush1.msra.mxu0 0.0
        %1017 = vmatprep.subr.mxu0 0.0
        %1018 = vmatpush1.msra.mxu0 0.0
        %1019 = vmatprep.subr.mxu0 0.0
        %1020 = vmatpush1.msra.mxu0 0.0
        %1021 = vmatprep.subr.mxu0 0.0
        %1022 = vmatpush1.msra.mxu0 0.0
        %1023 = vmatprep.subr.mxu0 0.0
        %1024 = vmatpush1.msra.mxu0 0.0
        %1025 = vmatprep.subr.mxu0 0.0
        %1026 = vmatpush1.msra.mxu0 %v990
        %1027 = vmatprep.subr.mxu0 0.0
        %1028 = vmatpush2.msra.mxu0 0.0
        %1029 = vmatprep.subr.mxu0 0.0
        %1030 = vmatpush2.msra.mxu0 0.0
        %1031 = vmatprep.subr.mxu0 0.0
        %1032 = vmatpush2.msra.mxu0 0.0
        %1033 = vmatprep.subr.mxu0 0.0
        %1034 = vmatpush2.msra.mxu0 0.0
        %1035 = vmatprep.subr.mxu0 0.0
        %1036 = vmatpush2.msra.mxu0 0.0
        %1037 = vmatprep.subr.mxu0 0.0
        %1038 = vmatpush2.msra.mxu0 0.0
        %1039 = vmatprep.subr.mxu0 0.0
        %1040 = vmatpush2.msra.mxu0 0.0
        %1041 = vmatprep.subr.mxu0 0.0
        %1042 = vmatpush2.msra.mxu0 0.0
        %1043 = vmatprep.subr.mxu0 0.0
        %1044 = vmatpush2.msra.mxu0 0.0
        %1045 = vmatprep.subr.mxu0 0.0
        %1046 = vmatpush2.msra.mxu0 0.0
        %1047 = vmatprep.subr.mxu0 0.0
        %1048 = vmatpush2.msra.mxu0 0.0
        %1049 = vmatprep.subr.mxu0 0.0
        %1050 = vmatpush2.msra.mxu0 0.0
        %1051 = vmatprep.subr.mxu0 0.0
        %1052 = vmatpush2.msra.mxu0 0.0
        %1053 = vmatprep.subr.mxu0 0.0
        %1054 = vmatpush2.msra.mxu0 0.0
        %1055 = vmatprep.subr.mxu0 0.0
        %1056 = vmatpush2.msra.mxu0 0.0
        %1057 = vmatprep.subr.mxu0 0.0
        %1058 = vmatpush2.msra.mxu0 0.0
        %1059 = vmatprep.mubr.f32.mxu0 0.0
        %1060 = vmatmul.mubr.f32.gmra.mxu0 %v993
        %v1061 = vpop.f32.mrf.mxu0
        %v1062 = vadd.f32 0.0, %v1061
        %v1063 = vpop.f32.mrf.mxu0
        %1064 = vdwg.mxu0
        %1066 = vrot.lane.b32.xlu0 %v732, 8
        %v1067 = vpop.permute.xlu0 %1066
        %1070 = vrot.lane.b32.xlu0 %v897, 16
        %v1071 = vpop.permute.xlu0 %1070
        %1074 = vrot.lane.b32.xlu0 %v1062, 24
        %v1075 = vpop.permute.xlu0 %1074
        %v1077 = vsel %vm408, %v567, %v1067
        %vm1078 = vcmask 130048
        %v1079 = vsel %vm1078, %v1077, %v1071
        %vm1080 = vcmask 195584
        %v1081 = vsel %vm1080, %v1079, %v1075
        %v1082 = vld [vmem:[#allocation7] sm:$0xff]
        %v1083 = vld [vmem:[#allocation7 + $0x8] sm:$0xff]
        %v1084 = vld [vmem:[#allocation7 + $0x10] sm:$0xff]
        %v1085 = vld [vmem:[#allocation7 + $0x18] sm:$0xff]
        %v1086 = vld [vmem:[%s4] sm:$0x1]
        %v1088 = vlaneseq
        %v1089 = vshrl.u32 %v1088, 7
        %v1090 = vsub.s32 0, %v1089
        %v1091 = vrot.slane %v1086, %v1090
        %vm1093 = vcmask 261120
        %v1095 = vsel %vm1093, %v1081, 0
        %1097 = vmatprep.subr.mxu0 0.0
        %1098 = vmatpush1.msra.mxu0 0.0
        %1099 = vmatprep.subr.mxu0 0.0
        %1100 = vmatpush1.msra.mxu0 0.0
        %1101 = vmatprep.subr.mxu0 0.0
        %1102 = vmatpush1.msra.mxu0 0.0
        %1103 = vmatprep.subr.mxu0 0.0
        %1104 = vmatpush1.msra.mxu0 0.0
        %1105 = vmatprep.subr.mxu0 0.0
        %1106 = vmatpush1.msra.mxu0 0.0
        %1107 = vmatprep.subr.mxu0 0.0
        %1108 = vmatpush1.msra.mxu0 0.0
        %1109 = vmatprep.subr.mxu0 0.0
        %1110 = vmatpush1.msra.mxu0 0.0
        %1111 = vmatprep.subr.mxu0 0.0
        %1112 = vmatpush1.msra.mxu0 0.0
        %1113 = vmatprep.subr.mxu0 0.0
        %1114 = vmatpush1.msra.mxu0 0.0
        %1115 = vmatprep.subr.mxu0 0.0
        %1116 = vmatpush1.msra.mxu0 0.0
        %1117 = vmatprep.subr.mxu0 0.0
        %1118 = vmatpush1.msra.mxu0 0.0
        %1119 = vmatprep.subr.mxu0 0.0
        %1120 = vmatpush1.msra.mxu0 0.0
        %1121 = vmatprep.subr.mxu0 0.0
        %1122 = vmatpush1.msra.mxu0 %v1085
        %1123 = vmatprep.subr.mxu0 0.0
        %1124 = vmatpush1.msra.mxu0 %v1084
        %1125 = vmatprep.subr.mxu0 0.0
        %1126 = vmatpush1.msra.mxu0 %v1083
        %1127 = vmatprep.subr.mxu0 0.0
        %1128 = vmatpush1.msra.mxu0 %v1082
        %1129 = vmatprep.subr.mxu0 0.0
        %1130 = vmatpush2.msra.mxu0 0.0
        %1131 = vmatprep.subr.mxu0 0.0
        %1132 = vmatpush2.msra.mxu0 0.0
        %1133 = vmatprep.subr.mxu0 0.0
        %1134 = vmatpush2.msra.mxu0 0.0
        %1135 = vmatprep.subr.mxu0 0.0
        %1136 = vmatpush2.msra.mxu0 0.0
        %1137 = vmatprep.subr.mxu0 0.0
        %1138 = vmatpush2.msra.mxu0 0.0
        %1139 = vmatprep.subr.mxu0 0.0
        %1140 = vmatpush2.msra.mxu0 0.0
        %1141 = vmatprep.subr.mxu0 0.0
        %1142 = vmatpush2.msra.mxu0 0.0
        %1143 = vmatprep.subr.mxu0 0.0
        %1144 = vmatpush2.msra.mxu0 0.0
        %1145 = vmatprep.subr.mxu0 0.0
        %1146 = vmatpush2.msra.mxu0 0.0
        %1147 = vmatprep.subr.mxu0 0.0
        %1148 = vmatpush2.msra.mxu0 0.0
        %1149 = vmatprep.subr.mxu0 0.0
        %1150 = vmatpush2.msra.mxu0 0.0
        %1151 = vmatprep.subr.mxu0 0.0
        %1152 = vmatpush2.msra.mxu0 0.0
        %1153 = vmatprep.subr.mxu0 0.0
        %1154 = vmatpush2.msra.mxu0 0.0
        %1155 = vmatprep.subr.mxu0 0.0
        %1156 = vmatpush2.msra.mxu0 0.0
        %1157 = vmatprep.subr.mxu0 0.0
        %1158 = vmatpush2.msra.mxu0 0.0
        %1159 = vmatprep.subr.mxu0 0.0
        %1160 = vmatpush2.msra.mxu0 0.0
        %1161 = vmatprep.mubr.f32.mxu0 0.0
        %1162 = vmatmul.mubr.f32.gmra.mxu0 %v1095
        %v1163 = vpop.f32.mrf.mxu0
        %v1164 = vadd.f32 %v1091, %v1163
        %v1165 = vpop.f32.mrf.mxu0
        %1166 = vdwg.mxu0
        %v1167 = vadd.f32 %v1164, %v311
        %v1168 = vld [vmem:[#allocation8] sm:$0xff]
        %v1169 = vld [vmem:[#allocation8 + $0x8] sm:$0xff]
        %v1170 = vld [vmem:[#allocation8 + $0x10] sm:$0xff]
        %v1171 = vld [vmem:[#allocation8 + $0x18] sm:$0xff]
        %v1172 = vld [vmem:[#allocation8 + $0x20] sm:$0xff]
        %v1173 = vld [vmem:[#allocation8 + $0x28] sm:$0xff]
        %v1174 = vld [vmem:[#allocation8 + $0x30] sm:$0xff]
        %v1175 = vld [vmem:[#allocation8 + $0x38] sm:$0xff]
        %v1176 = vld [vmem:[#allocation8 + $0x40] sm:$0xff]
        %v1177 = vld [vmem:[#allocation8 + $0x48] sm:$0xff]
        %v1178 = vld [vmem:[#allocation8 + $0x50] sm:$0xff]
        %v1179 = vld [vmem:[#allocation8 + $0x58] sm:$0xff]
        %v1180 = vld [vmem:[#allocation8 + $0x60] sm:$0xff]
        %v1181 = vld [vmem:[#allocation8 + $0x68] sm:$0xff]
        %v1182 = vld [vmem:[#allocation8 + $0x70] sm:$0xff]
        %v1183 = vld [vmem:[#allocation8 + $0x78] sm:$0xff]
        %1184 = vmatprep.subr.mxu0 0.0
        %1185 = vmatpush1.msra.mxu0 %v1183
        %1186 = vmatprep.subr.mxu0 0.0
        %1187 = vmatpush1.msra.mxu0 %v1182
        %1188 = vmatprep.subr.mxu0 0.0
        %1189 = vmatpush1.msra.mxu0 %v1181
        %1190 = vmatprep.subr.mxu0 0.0
        %1191 = vmatpush1.msra.mxu0 %v1180
        %1192 = vmatprep.subr.mxu0 0.0
        %1193 = vmatpush1.msra.mxu0 %v1179
        %1194 = vmatprep.subr.mxu0 0.0
        %1195 = vmatpush1.msra.mxu0 %v1178
        %1196 = vmatprep.subr.mxu0 0.0
        %1197 = vmatpush1.msra.mxu0 %v1177
        %1198 = vmatprep.subr.mxu0 0.0
        %1199 = vmatpush1.msra.mxu0 %v1176
        %1200 = vmatprep.subr.mxu0 0.0
        %1201 = vmatpush1.msra.mxu0 %v1175
        %1202 = vmatprep.subr.mxu0 0.0
        %1203 = vmatpush1.msra.mxu0 %v1174
        %1204 = vmatprep.subr.mxu0 0.0
        %1205 = vmatpush1.msra.mxu0 %v1173
        %1206 = vmatprep.subr.mxu0 0.0
        %1207 = vmatpush1.msra.mxu0 %v1172
        %1208 = vmatprep.subr.mxu0 0.0
        %1209 = vmatpush1.msra.mxu0 %v1171
        %1210 = vmatprep.subr.mxu0 0.0
        %1211 = vmatpush1.msra.mxu0 %v1170
        %1212 = vmatprep.subr.mxu0 0.0
        %1213 = vmatpush1.msra.mxu0 %v1169
        %1214 = vmatprep.subr.mxu0 0.0
        %1215 = vmatpush1.msra.mxu0 %v1168
        %1216 = vmatprep.subr.mxu0 0.0
        %1217 = vmatpush2.msra.mxu0 0.0
        %1218 = vmatprep.subr.mxu0 0.0
        %1219 = vmatpush2.msra.mxu0 0.0
        %1220 = vmatprep.subr.mxu0 0.0
        %1221 = vmatpush2.msra.mxu0 0.0
        %1222 = vmatprep.subr.mxu0 0.0
        %1223 = vmatpush2.msra.mxu0 0.0
        %1224 = vmatprep.subr.mxu0 0.0
        %1225 = vmatpush2.msra.mxu0 0.0
        %1226 = vmatprep.subr.mxu0 0.0
        %1227 = vmatpush2.msra.mxu0 0.0
        %1228 = vmatprep.subr.mxu0 0.0
        %1229 = vmatpush2.msra.mxu0 0.0
        %1230 = vmatprep.subr.mxu0 0.0
        %1231 = vmatpush2.msra.mxu0 0.0
        %1232 = vmatprep.subr.mxu0 0.0
        %1233 = vmatpush2.msra.mxu0 0.0
        %1234 = vmatprep.subr.mxu0 0.0
        %1235 = vmatpush2.msra.mxu0 0.0
        %1236 = vmatprep.subr.mxu0 0.0
        %1237 = vmatpush2.msra.mxu0 0.0
        %1238 = vmatprep.subr.mxu0 0.0
        %1239 = vmatpush2.msra.mxu0 0.0
        %1240 = vmatprep.subr.mxu0 0.0
        %1241 = vmatpush2.msra.mxu0 0.0
        %1242 = vmatprep.subr.mxu0 0.0
        %1243 = vmatpush2.msra.mxu0 0.0
        %1244 = vmatprep.subr.mxu0 0.0
        %1245 = vmatpush2.msra.mxu0 0.0
        %1246 = vmatprep.subr.mxu0 0.0
        %1247 = vmatpush2.msra.mxu0 0.0
        %1248 = vmatprep.mubr.f32.mxu0 0.0
        %1249 = vmatmul.mubr.f32.gmra.mxu0 %v1167
        %v1250 = vpop.f32.mrf.mxu0
        %v1251 = vadd.f32 %v1167, %v1250
        %v1252 = vpop.f32.mrf.mxu0
        %1253 = vdwg.mxu0
        %1254 = vst [vmem:[%s310] sm:$0xff] %v1251
        %s1255 = sand.u32 %s164, 1
        %s1256 = scalar_lea.sflag [#allocation4], %s1255
        %s1257 = sand.u32 %s164, 1
        %s1258 = smul.addr %s1257, 8
        %s1259 = scalar_lea.vmem [#allocation10], %s1258
        // Predicated region
        $region61: #{tpu_custom_call.1} parent=43 // pred_check
          %p1260 = pneg %p174
        $region62: #{tpu_custom_call.1} parent=43 // pred_check_branch
          %1262 = sbr.rel (%p1260) target = $region64
        $region63: #{tpu_custom_call.1} parent=43 // pred_region
          %s1264 = ssub.s32 128, 128
          %1265 = vsyncadd %s1256, %s1264
          %s1266 = smul.addr %s25, 128
          %s1267 = scalar_lea.hbm %s6, %s1266
          %s1269 = sshll.u32 %s1259, 4
          %s1270 = int_to_ptr.vmem [resolvable:$true] %s1269
          %1272 = dma.vmem_to_hbm [thread:$0]  %s1270, 128, %s1267, %s1256
        $region64: #{tpu_custom_call.1} parent=43 // pred_fallthru
          _
      $region44: #{tpu_custom_call.1} parent=5 // pred_fallthru
        _
      %p1273 = scmp.le.s32.totalorder 2, %s20
      // Predicated region
      $region65: #{tpu_custom_call.1} parent=5 // pred_check
        %p1274 = pneg %p1273
      $region66: #{tpu_custom_call.1} parent=5 // pred_check_branch
        %1276 = sbr.rel (%p1274) target = $region68
      $region67: #{tpu_custom_call.1} parent=5 // pred_region
        %s1277 = ssub.s32 %s20, 2
        // Predicated region
        $region69: #{tpu_custom_call.1} parent=67 // pred_check
          %p1278 = pneg %p180
        $region70: #{tpu_custom_call.1} parent=67 // pred_check_branch
          %1280 = sbr.rel (%p1278) target = $region72
        $region71: #{tpu_custom_call.1} parent=67 // pred_region
          %s1281 = sand.u32 %s165, 1
          %s1282 = scalar_lea.sflag [#allocation4], %s1281
          %s1283 = sand.u32 %s165, 1
          %s1284 = smul.addr %s1283, 8
          %s1285 = scalar_lea.vmem [#allocation10], %s1284
          %1286 = dma.done %s1282, 128
        $region72: #{tpu_custom_call.1} parent=67 // pred_fallthru
          _
      $region68: #{tpu_custom_call.1} parent=5 // pred_fallthru
        _
    $region6: #{tpu_custom_call.1} parent=1 // loop_footer
      %s24 = sadd.s32 1, %s20
    $region7: #{tpu_custom_call.1} parent=1 // loop_footer_branch
      %19 = sbr.rel target = $region3
    $region8: #{tpu_custom_call.1} parent=1 // loop_exit
      _
    %1287 = vsyncpa [#allocation3], 1
    %s1288 = scalar_lea.sflag [#allocation3], 1
    %1289 = vsyncpa %s1288, 1
    %1290 = vsyncpa [#allocation6], 1
    %1291 = vsyncpa [#allocation9], 1
    %1292 = vsyncpa [#allocation4], 1
    %s1293 = scalar_lea.sflag [#allocation4], 1
    %1294 = vsyncpa %s1293, 1

</llo_original>
